<compile_context>
chip_gen: v5e
topology: v5e:2x2
jax: 0.10.0
libtpu: 0.0.40
codegen_flags: <defaults>
</compile_context>

<pallas_src>
import functools
import math

import jax
import jax.numpy as jnp
from jax.experimental import pallas as pl
from jax.experimental.pallas import tpu as pltpu

EPS = 0.01  # per-layer epsilon; GLN.base_predictions uses max over layers


def _gln_fused_kernel(*refs, num_layers, eps):
    # refs = (x_ref, z_ref, [hT, bias, pow2, expand, cidx, wT, sel] * L, o_ref)
    x_ref = refs[0]
    z_ref = refs[1]
    layer_refs = refs[2:2 + 7 * num_layers]
    o_ref = refs[2 + 7 * num_layers]

    bound = jnp.float32(math.log((1.0 - eps) / eps))   # logit(1 - eps)

    # ---- first-layer prologue: logit(clamp(x)) with a single log ----------
    xc = jnp.clip(x_ref[...], eps, 1.0 - eps)
    lx = jnp.log(xc * pl.reciprocal(1.0 - xc, approx=False))      # [Nb, D0]

    z = z_ref[...]                                                # [Nb, Z]

    for l in range(num_layers):                                   # unrolled
        hT, b, pow2, expand, cidx, wT, sel = layer_refs[7 * l:7 * (l + 1)]

        # half-space gating:  g[n, k*H+h] = z[n] . hyper[k,h]
        g = jnp.dot(z, hT[...], preferred_element_type=jnp.float32)       # [Nb, K*H]
        bits = (g > b[...]).astype(jnp.float32)                           # [Nb, K*H]
        ctx = jnp.dot(bits, pow2[...], preferred_element_type=jnp.float32)  # [Nb, K]

        # one-hot context selection, flattened over (k, c)
        ctx_e = jnp.dot(ctx, expand[...], preferred_element_type=jnp.float32)  # [Nb, K*C]
        onehot = (jnp.abs(ctx_e - cidx[...]) < 0.5).astype(jnp.float32)

        # per-context geometric-mixture logits: la[n, k*C+c] = lx[n] . w[k,c]
        la = jnp.dot(lx, wT[...], preferred_element_type=jnp.float32)     # [Nb, K*C]
        logits = jnp.dot(la * onehot, sel[...],
                         preferred_element_type=jnp.float32)              # [Nb, Kout(_pad)]

        if l + 1 < num_layers:
            # clamp(sigmoid(L), eps, 1-eps) then logit(.)  ==  clamp(L, -B, B)
            lx = jnp.clip(logits, -bound, bound)
        else:
            # final layer: sigmoid via EUP exp + approx reciprocal
            p = pl.reciprocal(1.0 + jnp.exp(-logits), approx=True)
            o_ref[...] = jnp.clip(p, eps, 1.0 - eps)


def gln_forward(x, z, layer_params, eps=EPS, block_n=128):
    """Fused forward pass over all GLN layers in one pallas_call."""
    N, D = x.shape
    Zdim = z.shape[1]
    num_layers = len(layer_params)
    K_last = layer_params[-1]["K"]
    K_pad = ((K_last + 127) // 128) * 128           # lane-dense output slab

    # pad batch to a multiple of the block size (padded rows are harmless)
    n_pad = ((N + block_n - 1) // block_n) * block_n
    if n_pad != N:
        x = jnp.pad(x, ((0, n_pad - N), (0, 0)))
        z = jnp.pad(z, ((0, n_pad - N), (0, 0)))

    const_inputs = []
    for li, p in enumerate(layer_params):
        sel = p["sel"]
        if li == num_layers - 1 and K_pad != K_last:
            sel = jnp.pad(sel, ((0, 0), (0, K_pad - K_last)))  # zero cols -> lane-dense
        const_inputs += [p["hT"], p["bias"], p["pow2"],
                         p["expand"], p["cidx"], p["wT"], sel]

    grid = (n_pad // block_n,)
    in_specs = (
        [pl.BlockSpec((block_n, D), lambda i: (i, 0)),
         pl.BlockSpec((block_n, Zdim), lambda i: (i, 0))]
        + [pl.BlockSpec(c.shape, lambda i: (0, 0)) for c in const_inputs]
    )

    out = pl.pallas_call(
        functools.partial(_gln_fused_kernel, num_layers=num_layers, eps=eps),
        out_shape=jax.ShapeDtypeStruct((n_pad, K_pad), jnp.float32),
        grid=grid,
        in_specs=in_specs,
        out_specs=pl.BlockSpec((block_n, K_pad), lambda i: (i, 0)),
        compiler_params=pltpu.CompilerParams(
            dimension_semantics=("parallel",)),   # megacore split on v7x
    )(x, z, *const_inputs)
    return out[:N, :K_last]


def init_gln_layer(key, K, D_in, Z, H):
    """Deterministic GLN layer parameters + constant selection matrices."""
    C = 2 ** H
    hyper = jax.random.normal(key, (K, H, Z), dtype=jnp.float32) / jnp.sqrt(Z)
    bias = jnp.zeros((K, H), jnp.float32)                      # gate biases
    weights = jnp.full((K, C, D_in), 1.0 / D_in, jnp.float32)  # standard GLN init

    hT = hyper.reshape(K * H, Z).T                             # [Z, K*H]
    bias2 = bias.reshape(1, K * H)                             # [1, K*H]
    pow2 = jnp.kron(jnp.eye(K, dtype=jnp.float32),
                    (2.0 ** jnp.arange(H, dtype=jnp.float32))[:, None])   # [K*H, K]
    expand = jnp.kron(jnp.eye(K, dtype=jnp.float32),
                      jnp.ones((1, C), jnp.float32))           # [K, K*C]
    sel = jnp.kron(jnp.eye(K, dtype=jnp.float32),
                   jnp.ones((C, 1), jnp.float32))              # [K*C, K]
    cidx = jnp.tile(jnp.arange(C, dtype=jnp.float32), K).reshape(1, K * C)
    wT = weights.reshape(K * C, D_in).T                        # [D_in, K*C]
    return dict(K=K, H=H, C=C, hT=hT, bias=bias2, pow2=pow2,
                expand=expand, cidx=cidx, wT=wT, sel=sel)


def gln_base_predictions(z, eps=EPS):
    return jnp.clip(z, eps, 1.0 - eps)


# ------------------------- pure-JAX reference -------------------------------
def _gln_layer_ref(x, z, p, eps=EPS):
    xc = jnp.clip(x, eps, 1.0 - eps)
    lx = jnp.log(xc) - jnp.log(1.0 - xc)
    g = z @ p["hT"]
    bits = (g > p["bias"]).astype(jnp.float32)
    ctx = bits @ p["pow2"]
    onehot = (jnp.abs(ctx @ p["expand"] - p["cidx"]) < 0.5).astype(jnp.float32)
    la = lx @ p["wT"]
    logits = (la * onehot) @ p["sel"]
    return jnp.clip(jax.nn.sigmoid(logits), eps, 1.0 - eps)


# TODO(synk): forward_grad / clip_weights are training-side (in-place weight
# updates); only the inference forward pass is implemented here.

if __name__ == "__main__":
    N, D, Z, H = 256, 16, 16, 3        # small shapes (2 grid steps of 128 rows)
    layer_sizes = (32, 8)              # GLN(layer(K=32), layer(K=8))

    key = jax.random.PRNGKey(0)
    kx, kz, *kl = jax.random.split(key, 2 + len(layer_sizes))

    x = jax.random.uniform(kx, (N, D), jnp.float32, 0.05, 0.95)   # probabilities
    z = jax.random.uniform(kz, (N, Z), jnp.float32, 0.0, 1.0)     # side info

    params = []
    d_in = D
    for k, K in zip(kl, layer_sizes):
        params.append(init_gln_layer(k, K, d_in, Z, H))
        d_in = K

    out = gln_forward(x, z, params)
    out = jax.block_until_ready(out)

    # reference check (layer-by-layer, sigmoid/logit round-trips)
    ref = x
    for p in params:
        ref = _gln_layer_ref(ref, z, p)
    assert out.shape == (N, layer_sizes[-1])
    assert jnp.allclose(out, ref, atol=2e-3), "mismatch vs JAX reference"

    print("KERNEL_OK")
</pallas_src>

<mosaic_0001>
module attributes {stable_mosaic.version = 11 : i64} {
  func.func @_gln_fused_kernel(%arg0: i32, %arg1: memref<128x16xf32, #tpu.memory_space<vmem>>, %arg2: memref<128x16xf32, #tpu.memory_space<vmem>>, %arg3: memref<16x96xf32, #tpu.memory_space<vmem>>, %arg4: memref<1x96xf32, #tpu.memory_space<vmem>>, %arg5: memref<96x32xf32, #tpu.memory_space<vmem>>, %arg6: memref<32x256xf32, #tpu.memory_space<vmem>>, %arg7: memref<1x256xf32, #tpu.memory_space<vmem>>, %arg8: memref<16x256xf32, #tpu.memory_space<vmem>>, %arg9: memref<256x32xf32, #tpu.memory_space<vmem>>, %arg10: memref<16x24xf32, #tpu.memory_space<vmem>>, %arg11: memref<1x24xf32, #tpu.memory_space<vmem>>, %arg12: memref<24x8xf32, #tpu.memory_space<vmem>>, %arg13: memref<8x64xf32, #tpu.memory_space<vmem>>, %arg14: memref<1x64xf32, #tpu.memory_space<vmem>>, %arg15: memref<32x64xf32, #tpu.memory_space<vmem>>, %arg16: memref<64x128xf32, #tpu.memory_space<vmem>>, %arg17: memref<128x128xf32, #tpu.memory_space<vmem>>) attributes {dimension_semantics = [#tpu.dimension_semantics<parallel>], iteration_bounds = array<i64: 2>, scalar_prefetch = 0 : i64, scratch_operands = 0 : i64, tpu.core_type = #tpu.core_type<tc>, window_params = [{transform_indices = @transform_0, window_bounds = array<i64: 128, 16>}, {transform_indices = @transform_1, window_bounds = array<i64: 128, 16>}, {pipeline_mode = #tpu.pipeline_mode<synchronous>, transform_indices = @transform_2, window_bounds = array<i64: 16, 96>}, {pipeline_mode = #tpu.pipeline_mode<synchronous>, transform_indices = @transform_3, window_bounds = array<i64: 1, 96>}, {pipeline_mode = #tpu.pipeline_mode<synchronous>, transform_indices = @transform_4, window_bounds = array<i64: 96, 32>}, {pipeline_mode = #tpu.pipeline_mode<synchronous>, transform_indices = @transform_5, window_bounds = array<i64: 32, 256>}, {pipeline_mode = #tpu.pipeline_mode<synchronous>, transform_indices = @transform_6, window_bounds = array<i64: 1, 256>}, {pipeline_mode = #tpu.pipeline_mode<synchronous>, transform_indices = @transform_7, window_bounds = array<i64: 16, 256>}, {pipeline_mode = #tpu.pipeline_mode<synchronous>, transform_indices = @transform_8, window_bounds = array<i64: 256, 32>}, {pipeline_mode = #tpu.pipeline_mode<synchronous>, transform_indices = @transform_9, window_bounds = array<i64: 16, 24>}, {pipeline_mode = #tpu.pipeline_mode<synchronous>, transform_indices = @transform_10, window_bounds = array<i64: 1, 24>}, {pipeline_mode = #tpu.pipeline_mode<synchronous>, transform_indices = @transform_11, window_bounds = array<i64: 24, 8>}, {pipeline_mode = #tpu.pipeline_mode<synchronous>, transform_indices = @transform_12, window_bounds = array<i64: 8, 64>}, {pipeline_mode = #tpu.pipeline_mode<synchronous>, transform_indices = @transform_13, window_bounds = array<i64: 1, 64>}, {pipeline_mode = #tpu.pipeline_mode<synchronous>, transform_indices = @transform_14, window_bounds = array<i64: 32, 64>}, {pipeline_mode = #tpu.pipeline_mode<synchronous>, transform_indices = @transform_15, window_bounds = array<i64: 64, 128>}, {transform_indices = @transform_16, window_bounds = array<i64: 128, 128>}]} {
    %c0 = arith.constant 0 : index
    %c0_0 = arith.constant 0 : index
    %0 = vector.load %arg1[%c0, %c0_0] : memref<128x16xf32, #tpu.memory_space<vmem>>, vector<128x16xf32>
    %cst = arith.constant 0.00999999977 : f32
    %cst_1 = arith.constant 9.900000e-01 : f32
    %1 = vector.broadcast %cst : f32 to vector<128x16xf32>
    %2 = arith.maximumf %1, %0 : vector<128x16xf32>
    %3 = vector.broadcast %cst_1 : f32 to vector<128x16xf32>
    %4 = arith.minimumf %3, %2 : vector<128x16xf32>
    %cst_2 = arith.constant 1.000000e+00 : f32
    %5 = vector.broadcast %cst_2 : f32 to vector<128x16xf32>
    %6 = arith.subf %5, %4 : vector<128x16xf32>
    %7 = tpu.reciprocal %6 : vector<128x16xf32> -> vector<128x16xf32>
    %8 = arith.mulf %4, %7 : vector<128x16xf32>
    %9 = math.log %8 : vector<128x16xf32>
    %c0_3 = arith.constant 0 : index
    %c0_4 = arith.constant 0 : index
    %10 = vector.load %arg2[%c0_3, %c0_4] : memref<128x16xf32, #tpu.memory_space<vmem>>, vector<128x16xf32>
    %c0_5 = arith.constant 0 : index
    %c0_6 = arith.constant 0 : index
    %11 = vector.load %arg3[%c0_5, %c0_6] : memref<16x96xf32, #tpu.memory_space<vmem>>, vector<16x96xf32>
    %cst_7 = arith.constant dense<0.000000e+00> : vector<128x96xf32>
    %12 = tpu.matmul %10, %11, %cst_7 {dimension_numbers = #tpu.dot_dimension_numbers<[1], [0], [0], [1], [0, 0, 1, 1], [], []>} : vector<128x16xf32>, vector<16x96xf32>, vector<128x96xf32> -> vector<128x96xf32>
    %c0_8 = arith.constant 0 : index
    %c0_9 = arith.constant 0 : index
    %13 = vector.load %arg4[%c0_8, %c0_9] : memref<1x96xf32, #tpu.memory_space<vmem>>, vector<1x96xf32>
    %14 = vector.broadcast %13 : vector<1x96xf32> to vector<128x96xf32>
    %15 = arith.cmpf ogt, %12, %14 : vector<128x96xf32>
    %16 = arith.extui %15 : vector<128x96xi1> to vector<128x96xi32>
    %17 = arith.sitofp %16 : vector<128x96xi32> to vector<128x96xf32>
    %c0_10 = arith.constant 0 : index
    %c0_11 = arith.constant 0 : index
    %18 = vector.load %arg5[%c0_10, %c0_11] : memref<96x32xf32, #tpu.memory_space<vmem>>, vector<96x32xf32>
    %cst_12 = arith.constant dense<0.000000e+00> : vector<128x32xf32>
    %19 = tpu.matmul %17, %18, %cst_12 {dimension_numbers = #tpu.dot_dimension_numbers<[1], [0], [0], [1], [0, 0, 1, 1], [], []>} : vector<128x96xf32>, vector<96x32xf32>, vector<128x32xf32> -> vector<128x32xf32>
    %c0_13 = arith.constant 0 : index
    %c0_14 = arith.constant 0 : index
    %20 = vector.load %arg6[%c0_13, %c0_14] : memref<32x256xf32, #tpu.memory_space<vmem>>, vector<32x256xf32>
    %cst_15 = arith.constant dense<0.000000e+00> : vector<128x256xf32>
    %21 = tpu.matmul %19, %20, %cst_15 {dimension_numbers = #tpu.dot_dimension_numbers<[1], [0], [0], [1], [0, 0, 1, 1], [], []>} : vector<128x32xf32>, vector<32x256xf32>, vector<128x256xf32> -> vector<128x256xf32>
    %c0_16 = arith.constant 0 : index
    %c0_17 = arith.constant 0 : index
    %22 = vector.load %arg7[%c0_16, %c0_17] : memref<1x256xf32, #tpu.memory_space<vmem>>, vector<1x256xf32>
    %23 = vector.broadcast %22 : vector<1x256xf32> to vector<128x256xf32>
    %24 = arith.subf %21, %23 : vector<128x256xf32>
    %25 = math.absf %24 : vector<128x256xf32>
    %cst_18 = arith.constant 5.000000e-01 : f32
    %26 = vector.broadcast %cst_18 : f32 to vector<128x256xf32>
    %27 = arith.cmpf olt, %25, %26 : vector<128x256xf32>
    %28 = arith.extui %27 : vector<128x256xi1> to vector<128x256xi32>
    %29 = arith.sitofp %28 : vector<128x256xi32> to vector<128x256xf32>
    %c0_19 = arith.constant 0 : index
    %c0_20 = arith.constant 0 : index
    %30 = vector.load %arg8[%c0_19, %c0_20] : memref<16x256xf32, #tpu.memory_space<vmem>>, vector<16x256xf32>
    %cst_21 = arith.constant dense<0.000000e+00> : vector<128x256xf32>
    %31 = tpu.matmul %9, %30, %cst_21 {dimension_numbers = #tpu.dot_dimension_numbers<[1], [0], [0], [1], [0, 0, 1, 1], [], []>} : vector<128x16xf32>, vector<16x256xf32>, vector<128x256xf32> -> vector<128x256xf32>
    %32 = arith.mulf %31, %29 : vector<128x256xf32>
    %c0_22 = arith.constant 0 : index
    %c0_23 = arith.constant 0 : index
    %33 = vector.load %arg9[%c0_22, %c0_23] : memref<256x32xf32, #tpu.memory_space<vmem>>, vector<256x32xf32>
    %cst_24 = arith.constant dense<0.000000e+00> : vector<128x32xf32>
    %34 = tpu.matmul %32, %33, %cst_24 {dimension_numbers = #tpu.dot_dimension_numbers<[1], [0], [0], [1], [0, 0, 1, 1], [], []>} : vector<128x256xf32>, vector<256x32xf32>, vector<128x32xf32> -> vector<128x32xf32>
    %cst_25 = arith.constant 0.000000e+00 : f32
    %cst_26 = arith.constant 4.595120e+00 : f32
    %35 = arith.subf %cst_25, %cst_26 : f32
    %cst_27 = arith.constant 4.595120e+00 : f32
    %36 = vector.broadcast %35 : f32 to vector<128x32xf32>
    %37 = arith.maximumf %36, %34 : vector<128x32xf32>
    %38 = vector.broadcast %cst_27 : f32 to vector<128x32xf32>
    %39 = arith.minimumf %38, %37 : vector<128x32xf32>
    %c0_28 = arith.constant 0 : index
    %c0_29 = arith.constant 0 : index
    %40 = vector.load %arg10[%c0_28, %c0_29] : memref<16x24xf32, #tpu.memory_space<vmem>>, vector<16x24xf32>
    %cst_30 = arith.constant dense<0.000000e+00> : vector<128x24xf32>
    %41 = tpu.matmul %10, %40, %cst_30 {dimension_numbers = #tpu.dot_dimension_numbers<[1], [0], [0], [1], [0, 0, 1, 1], [], []>} : vector<128x16xf32>, vector<16x24xf32>, vector<128x24xf32> -> vector<128x24xf32>
    %c0_31 = arith.constant 0 : index
    %c0_32 = arith.constant 0 : index
    %42 = vector.load %arg11[%c0_31, %c0_32] : memref<1x24xf32, #tpu.memory_space<vmem>>, vector<1x24xf32>
    %43 = vector.broadcast %42 : vector<1x24xf32> to vector<128x24xf32>
    %44 = arith.cmpf ogt, %41, %43 : vector<128x24xf32>
    %45 = arith.extui %44 : vector<128x24xi1> to vector<128x24xi32>
    %46 = arith.sitofp %45 : vector<128x24xi32> to vector<128x24xf32>
    %c0_33 = arith.constant 0 : index
    %c0_34 = arith.constant 0 : index
    %47 = vector.load %arg12[%c0_33, %c0_34] : memref<24x8xf32, #tpu.memory_space<vmem>>, vector<24x8xf32>
    %cst_35 = arith.constant dense<0.000000e+00> : vector<128x8xf32>
    %48 = tpu.matmul %46, %47, %cst_35 {dimension_numbers = #tpu.dot_dimension_numbers<[1], [0], [0], [1], [0, 0, 1, 1], [], []>} : vector<128x24xf32>, vector<24x8xf32>, vector<128x8xf32> -> vector<128x8xf32>
    %c0_36 = arith.constant 0 : index
    %c0_37 = arith.constant 0 : index
    %49 = vector.load %arg13[%c0_36, %c0_37] : memref<8x64xf32, #tpu.memory_space<vmem>>, vector<8x64xf32>
    %cst_38 = arith.constant dense<0.000000e+00> : vector<128x64xf32>
    %50 = tpu.matmul %48, %49, %cst_38 {dimension_numbers = #tpu.dot_dimension_numbers<[1], [0], [0], [1], [0, 0, 1, 1], [], []>} : vector<128x8xf32>, vector<8x64xf32>, vector<128x64xf32> -> vector<128x64xf32>
    %c0_39 = arith.constant 0 : index
    %c0_40 = arith.constant 0 : index
    %51 = vector.load %arg14[%c0_39, %c0_40] : memref<1x64xf32, #tpu.memory_space<vmem>>, vector<1x64xf32>
    %52 = vector.broadcast %51 : vector<1x64xf32> to vector<128x64xf32>
    %53 = arith.subf %50, %52 : vector<128x64xf32>
    %54 = math.absf %53 : vector<128x64xf32>
    %cst_41 = arith.constant 5.000000e-01 : f32
    %55 = vector.broadcast %cst_41 : f32 to vector<128x64xf32>
    %56 = arith.cmpf olt, %54, %55 : vector<128x64xf32>
    %57 = arith.extui %56 : vector<128x64xi1> to vector<128x64xi32>
    %58 = arith.sitofp %57 : vector<128x64xi32> to vector<128x64xf32>
    %c0_42 = arith.constant 0 : index
    %c0_43 = arith.constant 0 : index
    %59 = vector.load %arg15[%c0_42, %c0_43] : memref<32x64xf32, #tpu.memory_space<vmem>>, vector<32x64xf32>
    %cst_44 = arith.constant dense<0.000000e+00> : vector<128x64xf32>
    %60 = tpu.matmul %39, %59, %cst_44 {dimension_numbers = #tpu.dot_dimension_numbers<[1], [0], [0], [1], [0, 0, 1, 1], [], []>} : vector<128x32xf32>, vector<32x64xf32>, vector<128x64xf32> -> vector<128x64xf32>
    %61 = arith.mulf %60, %58 : vector<128x64xf32>
    %c0_45 = arith.constant 0 : index
    %c0_46 = arith.constant 0 : index
    %62 = vector.load %arg16[%c0_45, %c0_46] : memref<64x128xf32, #tpu.memory_space<vmem>>, vector<64x128xf32>
    %cst_47 = arith.constant dense<0.000000e+00> : vector<128x128xf32>
    %63 = tpu.matmul %61, %62, %cst_47 {dimension_numbers = #tpu.dot_dimension_numbers<[1], [0], [0], [1], [0, 0, 1, 1], [], []>} : vector<128x64xf32>, vector<64x128xf32>, vector<128x128xf32> -> vector<128x128xf32>
    %cst_48 = arith.constant 0.000000e+00 : f32
    %64 = vector.broadcast %cst_48 : f32 to vector<128x128xf32>
    %65 = arith.subf %64, %63 : vector<128x128xf32>
    %66 = math.exp %65 : vector<128x128xf32>
    %cst_49 = arith.constant 1.000000e+00 : f32
    %67 = vector.broadcast %cst_49 : f32 to vector<128x128xf32>
    %68 = arith.addf %67, %66 : vector<128x128xf32>
    %69 = tpu.reciprocal %68 {approx = true} : vector<128x128xf32> -> vector<128x128xf32>
    %cst_50 = arith.constant 0.00999999977 : f32
    %cst_51 = arith.constant 9.900000e-01 : f32
    %70 = vector.broadcast %cst_50 : f32 to vector<128x128xf32>
    %71 = arith.maximumf %70, %69 : vector<128x128xf32>
    %72 = vector.broadcast %cst_51 : f32 to vector<128x128xf32>
    %73 = arith.minimumf %72, %71 : vector<128x128xf32>
    %c0_52 = arith.constant 0 : index
    %c0_53 = arith.constant 0 : index
    %74 = vector.load %arg17[%c0_52, %c0_53] : memref<128x128xf32, #tpu.memory_space<vmem>>, vector<128x128xf32>
    tpu.vector_store %arg17[%c0_52, %c0_53], %73 {strides = array<i32>} : memref<128x128xf32, #tpu.memory_space<vmem>>, vector<128x128xf32>,
    return
  }
  func.func @transform_0(%arg0: i32) -> (i32, i32) {
    %c0_i32 = arith.constant 0 : i32
    %c0_i32_0 = arith.constant 0 : i32
    return %arg0, %c0_i32 : i32, i32
  }
  func.func @transform_1(%arg0: i32) -> (i32, i32) {
    %c0_i32 = arith.constant 0 : i32
    %c0_i32_0 = arith.constant 0 : i32
    return %arg0, %c0_i32 : i32, i32
  }
  func.func @transform_2(%arg0: i32) -> (i32, i32) {
    %c0_i32 = arith.constant 0 : i32
    %c0_i32_0 = arith.constant 0 : i32
    %c0_i32_1 = arith.constant 0 : i32
    return %c0_i32, %c0_i32_0 : i32, i32
  }
  func.func @transform_3(%arg0: i32) -> (i32, i32) {
    %c0_i32 = arith.constant 0 : i32
    %c0_i32_0 = arith.constant 0 : i32
    %c0_i32_1 = arith.constant 0 : i32
    return %c0_i32, %c0_i32_0 : i32, i32
  }
  func.func @transform_4(%arg0: i32) -> (i32, i32) {
    %c0_i32 = arith.constant 0 : i32
    %c0_i32_0 = arith.constant 0 : i32
    %c0_i32_1 = arith.constant 0 : i32
    return %c0_i32, %c0_i32_0 : i32, i32
  }
  func.func @transform_5(%arg0: i32) -> (i32, i32) {
    %c0_i32 = arith.constant 0 : i32
    %c0_i32_0 = arith.constant 0 : i32
    %c0_i32_1 = arith.constant 0 : i32
    return %c0_i32, %c0_i32_0 : i32, i32
  }
  func.func @transform_6(%arg0: i32) -> (i32, i32) {
    %c0_i32 = arith.constant 0 : i32
    %c0_i32_0 = arith.constant 0 : i32
    %c0_i32_1 = arith.constant 0 : i32
    return %c0_i32, %c0_i32_0 : i32, i32
  }
  func.func @transform_7(%arg0: i32) -> (i32, i32) {
    %c0_i32 = arith.constant 0 : i32
    %c0_i32_0 = arith.constant 0 : i32
    %c0_i32_1 = arith.constant 0 : i32
    return %c0_i32, %c0_i32_0 : i32, i32
  }
  func.func @transform_8(%arg0: i32) -> (i32, i32) {
    %c0_i32 = arith.constant 0 : i32
    %c0_i32_0 = arith.constant 0 : i32
    %c0_i32_1 = arith.constant 0 : i32
    return %c0_i32, %c0_i32_0 : i32, i32
  }
  func.func @transform_9(%arg0: i32) -> (i32, i32) {
    %c0_i32 = arith.constant 0 : i32
    %c0_i32_0 = arith.constant 0 : i32
    %c0_i32_1 = arith.constant 0 : i32
    return %c0_i32, %c0_i32_0 : i32, i32
  }
  func.func @transform_10(%arg0: i32) -> (i32, i32) {
    %c0_i32 = arith.constant 0 : i32
    %c0_i32_0 = arith.constant 0 : i32
    %c0_i32_1 = arith.constant 0 : i32
    return %c0_i32, %c0_i32_0 : i32, i32
  }
  func.func @transform_11(%arg0: i32) -> (i32, i32) {
    %c0_i32 = arith.constant 0 : i32
    %c0_i32_0 = arith.constant 0 : i32
    %c0_i32_1 = arith.constant 0 : i32
    return %c0_i32, %c0_i32_0 : i32, i32
  }
  func.func @transform_12(%arg0: i32) -> (i32, i32) {
    %c0_i32 = arith.constant 0 : i32
    %c0_i32_0 = arith.constant 0 : i32
    %c0_i32_1 = arith.constant 0 : i32
    return %c0_i32, %c0_i32_0 : i32, i32
  }
  func.func @transform_13(%arg0: i32) -> (i32, i32) {
    %c0_i32 = arith.constant 0 : i32
    %c0_i32_0 = arith.constant 0 : i32
    %c0_i32_1 = arith.constant 0 : i32
    return %c0_i32, %c0_i32_0 : i32, i32
  }
  func.func @transform_14(%arg0: i32) -> (i32, i32) {
    %c0_i32 = arith.constant 0 : i32
    %c0_i32_0 = arith.constant 0 : i32
    %c0_i32_1 = arith.constant 0 : i32
    return %c0_i32, %c0_i32_0 : i32, i32
  }
  func.func @transform_15(%arg0: i32) -> (i32, i32) {
    %c0_i32 = arith.constant 0 : i32
    %c0_i32_0 = arith.constant 0 : i32
    %c0_i32_1 = arith.constant 0 : i32
    return %c0_i32, %c0_i32_0 : i32, i32
  }
  func.func @transform_16(%arg0: i32) -> (i32, i32) {
    %c0_i32 = arith.constant 0 : i32
    %c0_i32_0 = arith.constant 0 : i32
    return %arg0, %c0_i32 : i32, i32
  }
}

</mosaic_0001>

<llo_original>
// kernel: tpu_custom_call.1
$region0: #{tpu_custom_call.1}
  #allocation0 [shape = 'u32[]', space=smem, size = 0x4, offset = 0x4, fixed_abs, tag = 'smem constant byte address 0x4 - core index']
  #allocation1 [shape = 'u32[72,128]{1,0:T(1,128)}', space=vmem, size = 0x9000, scoped, tag = 'internal scratch']
  %s0 = inlined_call_operand.vmem [shape: f32[256,16], index: 0, kind: input, shape index: {}]
  %s1 = inlined_call_operand.vmem [shape: f32[256,16], index: 1, kind: input, shape index: {}]
  %s2 = inlined_call_operand.vmem [shape: f32[16,96], index: 2, kind: input, shape index: {}]
  %s3 = inlined_call_operand.vmem [shape: f32[1,96], index: 3, kind: input, shape index: {}]
  %s4 = inlined_call_operand.vmem [shape: f32[96,32], index: 4, kind: input, shape index: {}]
  %s5 = inlined_call_operand.vmem [shape: f32[32,256], index: 5, kind: input, shape index: {}]
  %s6 = inlined_call_operand.vmem [shape: f32[1,256], index: 6, kind: input, shape index: {}]
  %s7 = inlined_call_operand.vmem [shape: f32[16,256], index: 7, kind: input, shape index: {}]
  %s8 = inlined_call_operand.vmem [shape: f32[256,32], index: 8, kind: input, shape index: {}]
  %s9 = inlined_call_operand.vmem [shape: f32[16,24], index: 9, kind: input, shape index: {}]
  %s10 = inlined_call_operand.vmem [shape: f32[1,24], index: 10, kind: input, shape index: {}]
  %s11 = inlined_call_operand.vmem [shape: f32[24,8], index: 11, kind: input, shape index: {}]
  %s12 = inlined_call_operand.vmem [shape: f32[8,64], index: 12, kind: input, shape index: {}]
  %s13 = inlined_call_operand.vmem [shape: f32[1,64], index: 13, kind: input, shape index: {}]
  %s14 = inlined_call_operand.vmem [shape: f32[32,64], index: 14, kind: input, shape index: {}]
  %s15 = inlined_call_operand.vmem [shape: f32[64,128], index: 15, kind: input, shape index: {}]
  %s16 = inlined_call_operand.hbm [shape: f32[256,128], index: 16, kind: output, shape index: {}]
  %s17 = sld [smem:[#allocation0]]
  $region97: #{tpu_custom_call.1} parent=0
    _
  %s19 = ssub.s32 1, %s17
  %s20 = scalar_select 0, %s19, %s17
  $region1: #{tpu_custom_call.1} parent=0
    #allocation2 [shape = 'u8[131072]{0}', space=vmem, size = 0x20000, scoped, tag = 'output window, operand 0']
    #allocation3 [shape = 's32[2]{0}', space=sflag, size = 0x8, scoped, tag = 'scoped memory for tpu_custom_call.1']
    %21 = vsyncpa [#allocation3], 0
    %s22 = scalar_lea.sflag [#allocation3], 1
    %23 = vsyncpa %s22, 0
    loop: start=0, step=1, limit=4
    $region2: #{tpu_custom_call.1} parent=1 // loop_pre_header
      _
    $region3: #{tpu_custom_call.1} parent=1 // loop_header
      %s25 = sphi 0, %s29
      %p26 = scmp.ge.s32.totalorder %s25, 4
      %s35 = sphi 0, %s37
      %s38 = sphi 0, %s35
      %s39 = sphi 0, %s38
      %s55 = sphi 0, %s39
      %s61 = sphi 0, %s63
      %s64 = sphi 0, %s61
      %s65 = sphi 0, %s64
      %s81 = sphi 0, %s65
      %s85 = sphi 0, %s85
      %s87 = sphi 0, %s85
      %s88 = sphi 0, %s87
      %s102 = sphi 0, %s88
      %s106 = sphi 0, %s106
      %s108 = sphi 0, %s106
      %s109 = sphi 0, %s108
      %s123 = sphi 0, %s109
      %s127 = sphi 0, %s127
      %s129 = sphi 0, %s127
      %s130 = sphi 0, %s129
      %s144 = sphi 0, %s130
      %s148 = sphi 0, %s148
      %s150 = sphi 0, %s148
      %s151 = sphi 0, %s150
      %s165 = sphi 0, %s151
      %s169 = sphi 0, %s169
      %s171 = sphi 0, %s169
      %s172 = sphi 0, %s171
      %s186 = sphi 0, %s172
      %s190 = sphi 0, %s190
      %s192 = sphi 0, %s190
      %s193 = sphi 0, %s192
      %s207 = sphi 0, %s193
      %s211 = sphi 0, %s211
      %s213 = sphi 0, %s211
      %s214 = sphi 0, %s213
      %s228 = sphi 0, %s214
      %s232 = sphi 0, %s232
      %s234 = sphi 0, %s232
      %s235 = sphi 0, %s234
      %s249 = sphi 0, %s235
      %s253 = sphi 0, %s253
      %s255 = sphi 0, %s253
      %s256 = sphi 0, %s255
      %s270 = sphi 0, %s256
      %s274 = sphi 0, %s274
      %s276 = sphi 0, %s274
      %s277 = sphi 0, %s276
      %s291 = sphi 0, %s277
      %s295 = sphi 0, %s295
      %s297 = sphi 0, %s295
      %s298 = sphi 0, %s297
      %s312 = sphi 0, %s298
      %s316 = sphi 0, %s316
      %s318 = sphi 0, %s316
      %s319 = sphi 0, %s318
      %s333 = sphi 0, %s319
      %s337 = sphi 0, %s337
      %s339 = sphi 0, %s337
      %s340 = sphi 0, %s339
      %s354 = sphi 0, %s340
      %s358 = sphi 0, %s358
      %s360 = sphi 0, %s358
      %s361 = sphi 0, %s360
      %s375 = sphi 0, %s361
      %s381 = sphi 0, %s383
      %s384 = sphi 0, %s381
      %s385 = sphi 0, %s384
      %s401 = sphi 0, %s385
    $region4: #{tpu_custom_call.1} parent=1 // loop_header_branch
      %28 = sbr.rel (%p26) target = $region8
    $region5: #{tpu_custom_call.1} parent=1 // loop_body
      %s30 = ssub.s32 %s25, 1
      %s31 = ssub.s32 %s25, 2
      %s32 = sadd.s32 %s25, 1
      %s33 = ssub.s32 %s25, %s32
      %p34 = scmp.eq.s32.totalorder %s33, 0
      %s36 = sadd.s32 %s35, 1
      %s37 = scalar_select %p34, %s35, %s36
      %p40 = pneg %p34
      %p41 = scmp.eq.s32.totalorder %s25, 1
      %p42 = por %p40, %p41
      %p43 = scmp.ne.s32.totalorder %s35, %s38
      %p44 = scmp.eq.s32.totalorder %s25, 0
      %p45 = por %p43, %p44
      %p46 = scmp.ne.s32.totalorder %s35, %s38
      %p47 = scmp.eq.s32.totalorder %s30, 1
      %p48 = por %p46, %p47
      %p49 = scmp.ne.s32.totalorder %s38, %s39
      %p50 = scmp.eq.s32.totalorder %s30, 0
      %p51 = por %p49, %p50
      %p52 = scmp.ne.s32.totalorder %s38, %s39
      %p53 = scmp.eq.s32.totalorder %s31, 1
      %p54 = por %p52, %p53
      %p56 = scmp.ne.s32.totalorder %s39, %s55
      %p57 = scmp.eq.s32.totalorder %s31, 0
      %p58 = por %p56, %p57
      %s59 = ssub.s32 %s25, %s32
      %p60 = scmp.eq.s32.totalorder %s59, 0
      %s62 = sadd.s32 %s61, 1
      %s63 = scalar_select %p60, %s61, %s62
      %p66 = pneg %p60
      %p67 = scmp.eq.s32.totalorder %s25, 1
      %p68 = por %p66, %p67
      %p69 = scmp.ne.s32.totalorder %s61, %s64
      %p70 = scmp.eq.s32.totalorder %s25, 0
      %p71 = por %p69, %p70
      %p72 = scmp.ne.s32.totalorder %s61, %s64
      %p73 = scmp.eq.s32.totalorder %s30, 1
      %p74 = por %p72, %p73
      %p75 = scmp.ne.s32.totalorder %s64, %s65
      %p76 = scmp.eq.s32.totalorder %s30, 0
      %p77 = por %p75, %p76
      %p78 = scmp.ne.s32.totalorder %s64, %s65
      %p79 = scmp.eq.s32.totalorder %s31, 1
      %p80 = por %p78, %p79
      %p82 = scmp.ne.s32.totalorder %s65, %s81
      %p83 = scmp.eq.s32.totalorder %s31, 0
      %p84 = por %p82, %p83
      %s86 = sadd.s32 %s85, 1
      %p89 = scmp.eq.s32.totalorder %s25, 1
      %p90 = scmp.ne.s32.totalorder %s85, %s87
      %p91 = scmp.eq.s32.totalorder %s25, 0
      %p92 = por %p90, %p91
      %p93 = scmp.ne.s32.totalorder %s85, %s87
      %p94 = scmp.eq.s32.totalorder %s30, 1
      %p95 = por %p93, %p94
      %p96 = scmp.ne.s32.totalorder %s87, %s88
      %p97 = scmp.eq.s32.totalorder %s30, 0
      %p98 = por %p96, %p97
      %p99 = scmp.ne.s32.totalorder %s87, %s88
      %p100 = scmp.eq.s32.totalorder %s31, 1
      %p101 = por %p99, %p100
      %p103 = scmp.ne.s32.totalorder %s88, %s102
      %p104 = scmp.eq.s32.totalorder %s31, 0
      %p105 = por %p103, %p104
      %s107 = sadd.s32 %s106, 1
      %p110 = scmp.eq.s32.totalorder %s25, 1
      %p111 = scmp.ne.s32.totalorder %s106, %s108
      %p112 = scmp.eq.s32.totalorder %s25, 0
      %p113 = por %p111, %p112
      %p114 = scmp.ne.s32.totalorder %s106, %s108
      %p115 = scmp.eq.s32.totalorder %s30, 1
      %p116 = por %p114, %p115
      %p117 = scmp.ne.s32.totalorder %s108, %s109
      %p118 = scmp.eq.s32.totalorder %s30, 0
      %p119 = por %p117, %p118
      %p120 = scmp.ne.s32.totalorder %s108, %s109
      %p121 = scmp.eq.s32.totalorder %s31, 1
      %p122 = por %p120, %p121
      %p124 = scmp.ne.s32.totalorder %s109, %s123
      %p125 = scmp.eq.s32.totalorder %s31, 0
      %p126 = por %p124, %p125
      %s128 = sadd.s32 %s127, 1
      %p131 = scmp.eq.s32.totalorder %s25, 1
      %p132 = scmp.ne.s32.totalorder %s127, %s129
      %p133 = scmp.eq.s32.totalorder %s25, 0
      %p134 = por %p132, %p133
      %p135 = scmp.ne.s32.totalorder %s127, %s129
      %p136 = scmp.eq.s32.totalorder %s30, 1
      %p137 = por %p135, %p136
      %p138 = scmp.ne.s32.totalorder %s129, %s130
      %p139 = scmp.eq.s32.totalorder %s30, 0
      %p140 = por %p138, %p139
      %p141 = scmp.ne.s32.totalorder %s129, %s130
      %p142 = scmp.eq.s32.totalorder %s31, 1
      %p143 = por %p141, %p142
      %p145 = scmp.ne.s32.totalorder %s130, %s144
      %p146 = scmp.eq.s32.totalorder %s31, 0
      %p147 = por %p145, %p146
      %s149 = sadd.s32 %s148, 1
      %p152 = scmp.eq.s32.totalorder %s25, 1
      %p153 = scmp.ne.s32.totalorder %s148, %s150
      %p154 = scmp.eq.s32.totalorder %s25, 0
      %p155 = por %p153, %p154
      %p156 = scmp.ne.s32.totalorder %s148, %s150
      %p157 = scmp.eq.s32.totalorder %s30, 1
      %p158 = por %p156, %p157
      %p159 = scmp.ne.s32.totalorder %s150, %s151
      %p160 = scmp.eq.s32.totalorder %s30, 0
      %p161 = por %p159, %p160
      %p162 = scmp.ne.s32.totalorder %s150, %s151
      %p163 = scmp.eq.s32.totalorder %s31, 1
      %p164 = por %p162, %p163
      %p166 = scmp.ne.s32.totalorder %s151, %s165
      %p167 = scmp.eq.s32.totalorder %s31, 0
      %p168 = por %p166, %p167
      %s170 = sadd.s32 %s169, 1
      %p173 = scmp.eq.s32.totalorder %s25, 1
      %p174 = scmp.ne.s32.totalorder %s169, %s171
      %p175 = scmp.eq.s32.totalorder %s25, 0
      %p176 = por %p174, %p175
      %p177 = scmp.ne.s32.totalorder %s169, %s171
      %p178 = scmp.eq.s32.totalorder %s30, 1
      %p179 = por %p177, %p178
      %p180 = scmp.ne.s32.totalorder %s171, %s172
      %p181 = scmp.eq.s32.totalorder %s30, 0
      %p182 = por %p180, %p181
      %p183 = scmp.ne.s32.totalorder %s171, %s172
      %p184 = scmp.eq.s32.totalorder %s31, 1
      %p185 = por %p183, %p184
      %p187 = scmp.ne.s32.totalorder %s172, %s186
      %p188 = scmp.eq.s32.totalorder %s31, 0
      %p189 = por %p187, %p188
      %s191 = sadd.s32 %s190, 1
      %p194 = scmp.eq.s32.totalorder %s25, 1
      %p195 = scmp.ne.s32.totalorder %s190, %s192
      %p196 = scmp.eq.s32.totalorder %s25, 0
      %p197 = por %p195, %p196
      %p198 = scmp.ne.s32.totalorder %s190, %s192
      %p199 = scmp.eq.s32.totalorder %s30, 1
      %p200 = por %p198, %p199
      %p201 = scmp.ne.s32.totalorder %s192, %s193
      %p202 = scmp.eq.s32.totalorder %s30, 0
      %p203 = por %p201, %p202
      %p204 = scmp.ne.s32.totalorder %s192, %s193
      %p205 = scmp.eq.s32.totalorder %s31, 1
      %p206 = por %p204, %p205
      %p208 = scmp.ne.s32.totalorder %s193, %s207
      %p209 = scmp.eq.s32.totalorder %s31, 0
      %p210 = por %p208, %p209
      %s212 = sadd.s32 %s211, 1
      %p215 = scmp.eq.s32.totalorder %s25, 1
      %p216 = scmp.ne.s32.totalorder %s211, %s213
      %p217 = scmp.eq.s32.totalorder %s25, 0
      %p218 = por %p216, %p217
      %p219 = scmp.ne.s32.totalorder %s211, %s213
      %p220 = scmp.eq.s32.totalorder %s30, 1
      %p221 = por %p219, %p220
      %p222 = scmp.ne.s32.totalorder %s213, %s214
      %p223 = scmp.eq.s32.totalorder %s30, 0
      %p224 = por %p222, %p223
      %p225 = scmp.ne.s32.totalorder %s213, %s214
      %p226 = scmp.eq.s32.totalorder %s31, 1
      %p227 = por %p225, %p226
      %p229 = scmp.ne.s32.totalorder %s214, %s228
      %p230 = scmp.eq.s32.totalorder %s31, 0
      %p231 = por %p229, %p230
      %s233 = sadd.s32 %s232, 1
      %p236 = scmp.eq.s32.totalorder %s25, 1
      %p237 = scmp.ne.s32.totalorder %s232, %s234
      %p238 = scmp.eq.s32.totalorder %s25, 0
      %p239 = por %p237, %p238
      %p240 = scmp.ne.s32.totalorder %s232, %s234
      %p241 = scmp.eq.s32.totalorder %s30, 1
      %p242 = por %p240, %p241
      %p243 = scmp.ne.s32.totalorder %s234, %s235
      %p244 = scmp.eq.s32.totalorder %s30, 0
      %p245 = por %p243, %p244
      %p246 = scmp.ne.s32.totalorder %s234, %s235
      %p247 = scmp.eq.s32.totalorder %s31, 1
      %p248 = por %p246, %p247
      %p250 = scmp.ne.s32.totalorder %s235, %s249
      %p251 = scmp.eq.s32.totalorder %s31, 0
      %p252 = por %p250, %p251
      %s254 = sadd.s32 %s253, 1
      %p257 = scmp.eq.s32.totalorder %s25, 1
      %p258 = scmp.ne.s32.totalorder %s253, %s255
      %p259 = scmp.eq.s32.totalorder %s25, 0
      %p260 = por %p258, %p259
      %p261 = scmp.ne.s32.totalorder %s253, %s255
      %p262 = scmp.eq.s32.totalorder %s30, 1
      %p263 = por %p261, %p262
      %p264 = scmp.ne.s32.totalorder %s255, %s256
      %p265 = scmp.eq.s32.totalorder %s30, 0
      %p266 = por %p264, %p265
      %p267 = scmp.ne.s32.totalorder %s255, %s256
      %p268 = scmp.eq.s32.totalorder %s31, 1
      %p269 = por %p267, %p268
      %p271 = scmp.ne.s32.totalorder %s256, %s270
      %p272 = scmp.eq.s32.totalorder %s31, 0
      %p273 = por %p271, %p272
      %s275 = sadd.s32 %s274, 1
      %p278 = scmp.eq.s32.totalorder %s25, 1
      %p279 = scmp.ne.s32.totalorder %s274, %s276
      %p280 = scmp.eq.s32.totalorder %s25, 0
      %p281 = por %p279, %p280
      %p282 = scmp.ne.s32.totalorder %s274, %s276
      %p283 = scmp.eq.s32.totalorder %s30, 1
      %p284 = por %p282, %p283
      %p285 = scmp.ne.s32.totalorder %s276, %s277
      %p286 = scmp.eq.s32.totalorder %s30, 0
      %p287 = por %p285, %p286
      %p288 = scmp.ne.s32.totalorder %s276, %s277
      %p289 = scmp.eq.s32.totalorder %s31, 1
      %p290 = por %p288, %p289
      %p292 = scmp.ne.s32.totalorder %s277, %s291
      %p293 = scmp.eq.s32.totalorder %s31, 0
      %p294 = por %p292, %p293
      %s296 = sadd.s32 %s295, 1
      %p299 = scmp.eq.s32.totalorder %s25, 1
      %p300 = scmp.ne.s32.totalorder %s295, %s297
      %p301 = scmp.eq.s32.totalorder %s25, 0
      %p302 = por %p300, %p301
      %p303 = scmp.ne.s32.totalorder %s295, %s297
      %p304 = scmp.eq.s32.totalorder %s30, 1
      %p305 = por %p303, %p304
      %p306 = scmp.ne.s32.totalorder %s297, %s298
      %p307 = scmp.eq.s32.totalorder %s30, 0
      %p308 = por %p306, %p307
      %p309 = scmp.ne.s32.totalorder %s297, %s298
      %p310 = scmp.eq.s32.totalorder %s31, 1
      %p311 = por %p309, %p310
      %p313 = scmp.ne.s32.totalorder %s298, %s312
      %p314 = scmp.eq.s32.totalorder %s31, 0
      %p315 = por %p313, %p314
      %s317 = sadd.s32 %s316, 1
      %p320 = scmp.eq.s32.totalorder %s25, 1
      %p321 = scmp.ne.s32.totalorder %s316, %s318
      %p322 = scmp.eq.s32.totalorder %s25, 0
      %p323 = por %p321, %p322
      %p324 = scmp.ne.s32.totalorder %s316, %s318
      %p325 = scmp.eq.s32.totalorder %s30, 1
      %p326 = por %p324, %p325
      %p327 = scmp.ne.s32.totalorder %s318, %s319
      %p328 = scmp.eq.s32.totalorder %s30, 0
      %p329 = por %p327, %p328
      %p330 = scmp.ne.s32.totalorder %s318, %s319
      %p331 = scmp.eq.s32.totalorder %s31, 1
      %p332 = por %p330, %p331
      %p334 = scmp.ne.s32.totalorder %s319, %s333
      %p335 = scmp.eq.s32.totalorder %s31, 0
      %p336 = por %p334, %p335
      %s338 = sadd.s32 %s337, 1
      %p341 = scmp.eq.s32.totalorder %s25, 1
      %p342 = scmp.ne.s32.totalorder %s337, %s339
      %p343 = scmp.eq.s32.totalorder %s25, 0
      %p344 = por %p342, %p343
      %p345 = scmp.ne.s32.totalorder %s337, %s339
      %p346 = scmp.eq.s32.totalorder %s30, 1
      %p347 = por %p345, %p346
      %p348 = scmp.ne.s32.totalorder %s339, %s340
      %p349 = scmp.eq.s32.totalorder %s30, 0
      %p350 = por %p348, %p349
      %p351 = scmp.ne.s32.totalorder %s339, %s340
      %p352 = scmp.eq.s32.totalorder %s31, 1
      %p353 = por %p351, %p352
      %p355 = scmp.ne.s32.totalorder %s340, %s354
      %p356 = scmp.eq.s32.totalorder %s31, 0
      %p357 = por %p355, %p356
      %s359 = sadd.s32 %s358, 1
      %p362 = scmp.eq.s32.totalorder %s25, 1
      %p363 = scmp.ne.s32.totalorder %s358, %s360
      %p364 = scmp.eq.s32.totalorder %s25, 0
      %p365 = por %p363, %p364
      %p366 = scmp.ne.s32.totalorder %s358, %s360
      %p367 = scmp.eq.s32.totalorder %s30, 1
      %p368 = por %p366, %p367
      %p369 = scmp.ne.s32.totalorder %s360, %s361
      %p370 = scmp.eq.s32.totalorder %s30, 0
      %p371 = por %p369, %p370
      %p372 = scmp.ne.s32.totalorder %s360, %s361
      %p373 = scmp.eq.s32.totalorder %s31, 1
      %p374 = por %p372, %p373
      %p376 = scmp.ne.s32.totalorder %s361, %s375
      %p377 = scmp.eq.s32.totalorder %s31, 0
      %p378 = por %p376, %p377
      %s379 = ssub.s32 %s25, %s32
      %p380 = scmp.eq.s32.totalorder %s379, 0
      %s382 = sadd.s32 %s381, 1
      %s383 = scalar_select %p380, %s381, %s382
      %p386 = pneg %p380
      %p387 = scmp.eq.s32.totalorder %s25, 1
      %p388 = por %p386, %p387
      %p389 = scmp.ne.s32.totalorder %s381, %s384
      %p390 = scmp.eq.s32.totalorder %s25, 0
      %p391 = por %p389, %p390
      %p392 = scmp.ne.s32.totalorder %s381, %s384
      %p393 = scmp.eq.s32.totalorder %s30, 1
      %p394 = por %p392, %p393
      %p395 = scmp.ne.s32.totalorder %s384, %s385
      %p396 = scmp.eq.s32.totalorder %s30, 0
      %p397 = por %p395, %p396
      %p398 = scmp.ne.s32.totalorder %s384, %s385
      %p399 = scmp.eq.s32.totalorder %s31, 1
      %p400 = por %p398, %p399
      %p402 = scmp.ne.s32.totalorder %s385, %s401
      %p403 = scmp.eq.s32.totalorder %s31, 0
      %p404 = por %p402, %p403
      %p405 = scmp.le.s32.totalorder 1, %s25
      %p406 = scmp.lt.s32.totalorder %s25, 3
      %p407 = pnand %p405, %p406
      %p408 = pneg %p407
      // Predicated region
      $region9: #{tpu_custom_call.1} parent=5 // pred_check
        _
      $region10: #{tpu_custom_call.1} parent=5 // pred_check_branch
        %410 = sbr.rel (%p407) target = $region12
      $region11: #{tpu_custom_call.1} parent=5 // pred_region
        %s411 = ssub.s32 %s25, 1
        // Predicated region
        $region13: #{tpu_custom_call.1} parent=11 // pred_check
          %p412 = pneg %p98
        $region14: #{tpu_custom_call.1} parent=11 // pred_check_branch
          %414 = sbr.rel (%p412) target = $region16
        $region15: #{tpu_custom_call.1} parent=11 // pred_region
          _
        $region16: #{tpu_custom_call.1} parent=11 // pred_fallthru
          _
        // Predicated region
        $region17: #{tpu_custom_call.1} parent=11 // pred_check
          %p415 = pneg %p119
        $region18: #{tpu_custom_call.1} parent=11 // pred_check_branch
          %417 = sbr.rel (%p415) target = $region20
        $region19: #{tpu_custom_call.1} parent=11 // pred_region
          _
        $region20: #{tpu_custom_call.1} parent=11 // pred_fallthru
          _
        // Predicated region
        $region21: #{tpu_custom_call.1} parent=11 // pred_check
          %p418 = pneg %p140
        $region22: #{tpu_custom_call.1} parent=11 // pred_check_branch
          %420 = sbr.rel (%p418) target = $region24
        $region23: #{tpu_custom_call.1} parent=11 // pred_region
          _
        $region24: #{tpu_custom_call.1} parent=11 // pred_fallthru
          _
        // Predicated region
        $region25: #{tpu_custom_call.1} parent=11 // pred_check
          %p421 = pneg %p161
        $region26: #{tpu_custom_call.1} parent=11 // pred_check_branch
          %423 = sbr.rel (%p421) target = $region28
        $region27: #{tpu_custom_call.1} parent=11 // pred_region
          _
        $region28: #{tpu_custom_call.1} parent=11 // pred_fallthru
          _
        // Predicated region
        $region29: #{tpu_custom_call.1} parent=11 // pred_check
          %p424 = pneg %p182
        $region30: #{tpu_custom_call.1} parent=11 // pred_check_branch
          %426 = sbr.rel (%p424) target = $region32
        $region31: #{tpu_custom_call.1} parent=11 // pred_region
          _
        $region32: #{tpu_custom_call.1} parent=11 // pred_fallthru
          _
        // Predicated region
        $region33: #{tpu_custom_call.1} parent=11 // pred_check
          %p427 = pneg %p203
        $region34: #{tpu_custom_call.1} parent=11 // pred_check_branch
          %429 = sbr.rel (%p427) target = $region36
        $region35: #{tpu_custom_call.1} parent=11 // pred_region
          _
        $region36: #{tpu_custom_call.1} parent=11 // pred_fallthru
          _
        // Predicated region
        $region37: #{tpu_custom_call.1} parent=11 // pred_check
          %p430 = pneg %p224
        $region38: #{tpu_custom_call.1} parent=11 // pred_check_branch
          %432 = sbr.rel (%p430) target = $region40
        $region39: #{tpu_custom_call.1} parent=11 // pred_region
          _
        $region40: #{tpu_custom_call.1} parent=11 // pred_fallthru
          _
        // Predicated region
        $region41: #{tpu_custom_call.1} parent=11 // pred_check
          %p433 = pneg %p245
        $region42: #{tpu_custom_call.1} parent=11 // pred_check_branch
          %435 = sbr.rel (%p433) target = $region44
        $region43: #{tpu_custom_call.1} parent=11 // pred_region
          _
        $region44: #{tpu_custom_call.1} parent=11 // pred_fallthru
          _
        // Predicated region
        $region45: #{tpu_custom_call.1} parent=11 // pred_check
          %p436 = pneg %p266
        $region46: #{tpu_custom_call.1} parent=11 // pred_check_branch
          %438 = sbr.rel (%p436) target = $region48
        $region47: #{tpu_custom_call.1} parent=11 // pred_region
          _
        $region48: #{tpu_custom_call.1} parent=11 // pred_fallthru
          _
        // Predicated region
        $region49: #{tpu_custom_call.1} parent=11 // pred_check
          %p439 = pneg %p287
        $region50: #{tpu_custom_call.1} parent=11 // pred_check_branch
          %441 = sbr.rel (%p439) target = $region52
        $region51: #{tpu_custom_call.1} parent=11 // pred_region
          _
        $region52: #{tpu_custom_call.1} parent=11 // pred_fallthru
          _
        // Predicated region
        $region53: #{tpu_custom_call.1} parent=11 // pred_check
          %p442 = pneg %p308
        $region54: #{tpu_custom_call.1} parent=11 // pred_check_branch
          %444 = sbr.rel (%p442) target = $region56
        $region55: #{tpu_custom_call.1} parent=11 // pred_region
          _
        $region56: #{tpu_custom_call.1} parent=11 // pred_fallthru
          _
        // Predicated region
        $region57: #{tpu_custom_call.1} parent=11 // pred_check
          %p445 = pneg %p329
        $region58: #{tpu_custom_call.1} parent=11 // pred_check_branch
          %447 = sbr.rel (%p445) target = $region60
        $region59: #{tpu_custom_call.1} parent=11 // pred_region
          _
        $region60: #{tpu_custom_call.1} parent=11 // pred_fallthru
          _
        // Predicated region
        $region61: #{tpu_custom_call.1} parent=11 // pred_check
          %p448 = pneg %p350
        $region62: #{tpu_custom_call.1} parent=11 // pred_check_branch
          %450 = sbr.rel (%p448) target = $region64
        $region63: #{tpu_custom_call.1} parent=11 // pred_region
          _
        $region64: #{tpu_custom_call.1} parent=11 // pred_fallthru
          _
        // Predicated region
        $region65: #{tpu_custom_call.1} parent=11 // pred_check
          %p451 = pneg %p371
        $region66: #{tpu_custom_call.1} parent=11 // pred_check_branch
          %453 = sbr.rel (%p451) target = $region68
        $region67: #{tpu_custom_call.1} parent=11 // pred_region
          _
        $region68: #{tpu_custom_call.1} parent=11 // pred_fallthru
          _
      $region12: #{tpu_custom_call.1} parent=5 // pred_fallthru
        _
      %p454 = scmp.lt.s32.totalorder %s25, 2
      // Predicated region
      $region69: #{tpu_custom_call.1} parent=5 // pred_check
        %p455 = pneg %p454
      $region70: #{tpu_custom_call.1} parent=5 // pred_check_branch
        %457 = sbr.rel (%p455) target = $region72
      $region71: #{tpu_custom_call.1} parent=5 // pred_region
        // Predicated region
        $region73: #{tpu_custom_call.1} parent=71 // pred_check
          %p458 = pneg %p45
        $region74: #{tpu_custom_call.1} parent=71 // pred_check_branch
          %460 = sbr.rel (%p458) target = $region76
        $region75: #{tpu_custom_call.1} parent=71 // pred_region
          %s461 = smul.u32 16, %s25
          %p462 = scmp.lt.s32.totalorder %s461, 31
          %s463 = scalar_select %p462, %s461, 31
          %s464 = smul.addr %s463, 8
          %s465 = scalar_lea.vmem %s0, %s464
          %s466 = smul.u32 16, %s25
        $region76: #{tpu_custom_call.1} parent=71 // pred_fallthru
          _
        // Predicated region
        $region77: #{tpu_custom_call.1} parent=71 // pred_check
          %p467 = pneg %p71
        $region78: #{tpu_custom_call.1} parent=71 // pred_check_branch
          %469 = sbr.rel (%p467) target = $region80
        $region79: #{tpu_custom_call.1} parent=71 // pred_region
          %s470 = smul.u32 16, %s25
          %p471 = scmp.lt.s32.totalorder %s470, 31
          %s472 = scalar_select %p471, %s470, 31
          %s473 = smul.addr %s472, 8
          %s474 = scalar_lea.vmem %s1, %s473
          %s475 = smul.u32 16, %s25
        $region80: #{tpu_custom_call.1} parent=71 // pred_fallthru
          _
      $region72: #{tpu_custom_call.1} parent=5 // pred_fallthru
        _
      %p476 = scmp.le.s32.totalorder 1, %s25
      %p477 = scmp.lt.s32.totalorder %s25, 3
      %p478 = pnand %p476, %p477
      %p479 = pneg %p478
      // Predicated region
      $region81: #{tpu_custom_call.1} parent=5 // pred_check
        _
      $region82: #{tpu_custom_call.1} parent=5 // pred_check_branch
        %481 = sbr.rel (%p478) target = $region84
      $region83: #{tpu_custom_call.1} parent=5 // pred_region
        %s482 = ssub.s32 %s25, 1
        %s483 = smul.u32 16, %s30
        %p484 = scmp.lt.s32.totalorder %s483, 31
        %s485 = scalar_select %p484, %s483, 31
        %s486 = smul.addr %s485, 8
        %s487 = scalar_lea.vmem %s0, %s486
        %p488 = pneg %p51
        %p489 = pneg %p48
        %s490 = smul.u32 16, %s30
        %p491 = scmp.lt.s32.totalorder %s490, 31
        %s492 = scalar_select %p491, %s490, 31
        %s493 = smul.addr %s492, 8
        %s494 = scalar_lea.vmem %s1, %s493
        %p495 = pneg %p77
        %p496 = pneg %p74
        %p497 = pneg %p98
        %p498 = pneg %p95
        %p499 = pneg %p119
        %p500 = pneg %p116
        %p501 = pneg %p140
        %p502 = pneg %p137
        %p503 = pneg %p161
        %p504 = pneg %p158
        %p505 = pneg %p182
        %p506 = pneg %p179
        %p507 = pneg %p203
        %p508 = pneg %p200
        %p509 = pneg %p224
        %p510 = pneg %p221
        %p511 = pneg %p245
        %p512 = pneg %p242
        %p513 = pneg %p266
        %p514 = pneg %p263
        %p515 = pneg %p287
        %p516 = pneg %p284
        %p517 = pneg %p308
        %p518 = pneg %p305
        %p519 = pneg %p329
        %p520 = pneg %p326
        %p521 = pneg %p350
        %p522 = pneg %p347
        %p523 = pneg %p371
        %p524 = pneg %p368
        %p525 = pneg %p397
        %p526 = pneg %p394
        %s527 = sand.u32 %s384, 1
        %s528 = scalar_lea.sflag [#allocation3], %s527
        %s529 = sand.u32 %s384, 1
        %s530 = smul.addr %s529, 128
        %s531 = scalar_lea.vmem [#allocation2], %s530
        %s532 = smul.u32 16, %s30
        %p533 = scmp.lt.s32.totalorder %s532, 31
        %s534 = scalar_select %p533, %s532, 31
        %s535 = smul.addr %s534, 8
        %s536 = scalar_lea.vmem %s0, %s535
        %s537 = smul.u32 16, %s30
        %s538 = smul.u32 16, %s30
        %p539 = scmp.lt.s32.totalorder %s538, 31
        %s540 = scalar_select %p539, %s538, 31
        %s541 = smul.addr %s540, 8
        %s542 = scalar_lea.vmem %s1, %s541
        %s543 = smul.u32 16, %s30
        %s544 = smul.u32 16, %s30
        %v545 = vld [vmem:[%s536] sm:$0xff]
        %v546 = vld [vmem:[%s536 + $0x8] sm:$0xff]
        %v547 = vld [vmem:[%s536 + $0x10] sm:$0xff]
        %v548 = vld [vmem:[%s536 + $0x18] sm:$0xff]
        %v549 = vld [vmem:[%s536 + $0x20] sm:$0xff]
        %v550 = vld [vmem:[%s536 + $0x28] sm:$0xff]
        %v551 = vld [vmem:[%s536 + $0x30] sm:$0xff]
        %v552 = vld [vmem:[%s536 + $0x38] sm:$0xff]
        %v553 = vld [vmem:[%s536 + $0x40] sm:$0xff]
        %v554 = vld [vmem:[%s536 + $0x48] sm:$0xff]
        %v555 = vld [vmem:[%s536 + $0x50] sm:$0xff]
        %v556 = vld [vmem:[%s536 + $0x58] sm:$0xff]
        %v557 = vld [vmem:[%s536 + $0x60] sm:$0xff]
        %v558 = vld [vmem:[%s536 + $0x68] sm:$0xff]
        %v559 = vld [vmem:[%s536 + $0x70] sm:$0xff]
        %v560 = vld [vmem:[%s536 + $0x78] sm:$0xff]
        %v561 = vmax.f32 %v545, 0.01
        %v562 = vmax.f32 %v546, 0.01
        %v563 = vmax.f32 %v547, 0.01
        %v564 = vmax.f32 %v548, 0.01
        %v565 = vmax.f32 %v549, 0.01
        %v566 = vmax.f32 %v550, 0.01
        %v567 = vmax.f32 %v551, 0.01
        %v568 = vmax.f32 %v552, 0.01
        %v569 = vmax.f32 %v553, 0.01
        %v570 = vmax.f32 %v554, 0.01
        %v571 = vmax.f32 %v555, 0.01
        %v572 = vmax.f32 %v556, 0.01
        %v573 = vmax.f32 %v557, 0.01
        %v574 = vmax.f32 %v558, 0.01
        %v575 = vmax.f32 %v559, 0.01
        %v576 = vmax.f32 %v560, 0.01
        %v577 = vmin.f32 %v561, 0.99
        %v578 = vmin.f32 %v562, 0.99
        %v579 = vmin.f32 %v563, 0.99
        %v580 = vmin.f32 %v564, 0.99
        %v581 = vmin.f32 %v565, 0.99
        %v582 = vmin.f32 %v566, 0.99
        %v583 = vmin.f32 %v567, 0.99
        %v584 = vmin.f32 %v568, 0.99
        %v585 = vmin.f32 %v569, 0.99
        %v586 = vmin.f32 %v570, 0.99
        %v587 = vmin.f32 %v571, 0.99
        %v588 = vmin.f32 %v572, 0.99
        %v589 = vmin.f32 %v573, 0.99
        %v590 = vmin.f32 %v574, 0.99
        %v591 = vmin.f32 %v575, 0.99
        %v592 = vmin.f32 %v576, 0.99
        %v593 = vsub.f32 1.0, %v577
        %v594 = vsub.f32 1.0, %v578
        %v595 = vsub.f32 1.0, %v579
        %v596 = vsub.f32 1.0, %v580
        %v597 = vsub.f32 1.0, %v581
        %v598 = vsub.f32 1.0, %v582
        %v599 = vsub.f32 1.0, %v583
        %v600 = vsub.f32 1.0, %v584
        %v601 = vsub.f32 1.0, %v585
        %v602 = vsub.f32 1.0, %v586
        %v603 = vsub.f32 1.0, %v587
        %v604 = vsub.f32 1.0, %v588
        %v605 = vsub.f32 1.0, %v589
        %v606 = vsub.f32 1.0, %v590
        %v607 = vsub.f32 1.0, %v591
        %v608 = vsub.f32 1.0, %v592
        %v609 = vrcp.pop %v593
        %v610 = vmul.f32 %v593, %v609
        %v611 = vsub.f32 1.0, %v610
        %v612 = vmul.f32 %v609, %v611
        %v613 = vadd.f32 %v609, %v612
        %vm614 = vweird.f32 %v593
        %vm615 = vweird.f32 %v609
        %vm616 = vmor %vm614, %vm615
        %v617 = vsel %vm616, %v609, %v613
        %v618 = vand.u32 2147483647, %v593
        %vm619 = vcmp.eq.f32.partialorder %v618, 8.507059e+37
        %v620 = vand.u32 %v593, 2147483648
        %v621 = vor.u32 1.1754944e-38, %v620
        %v622 = vsel %vm619, %v621, %v617
        %v623 = vrcp.pop %v594
        %v624 = vmul.f32 %v594, %v623
        %v625 = vsub.f32 1.0, %v624
        %v626 = vmul.f32 %v623, %v625
        %v627 = vadd.f32 %v623, %v626
        %vm628 = vweird.f32 %v594
        %vm629 = vweird.f32 %v623
        %vm630 = vmor %vm628, %vm629
        %v631 = vsel %vm630, %v623, %v627
        %v632 = vand.u32 2147483647, %v594
        %vm633 = vcmp.eq.f32.partialorder %v632, 8.507059e+37
        %v634 = vand.u32 %v594, 2147483648
        %v635 = vor.u32 1.1754944e-38, %v634
        %v636 = vsel %vm633, %v635, %v631
        %v637 = vrcp.pop %v595
        %v638 = vmul.f32 %v595, %v637
        %v639 = vsub.f32 1.0, %v638
        %v640 = vmul.f32 %v637, %v639
        %v641 = vadd.f32 %v637, %v640
        %vm642 = vweird.f32 %v595
        %vm643 = vweird.f32 %v637
        %vm644 = vmor %vm642, %vm643
        %v645 = vsel %vm644, %v637, %v641
        %v646 = vand.u32 2147483647, %v595
        %vm647 = vcmp.eq.f32.partialorder %v646, 8.507059e+37
        %v648 = vand.u32 %v595, 2147483648
        %v649 = vor.u32 1.1754944e-38, %v648
        %v650 = vsel %vm647, %v649, %v645
        %v651 = vrcp.pop %v596
        %v652 = vmul.f32 %v596, %v651
        %v653 = vsub.f32 1.0, %v652
        %v654 = vmul.f32 %v651, %v653
        %v655 = vadd.f32 %v651, %v654
        %vm656 = vweird.f32 %v596
        %vm657 = vweird.f32 %v651
        %vm658 = vmor %vm656, %vm657
        %v659 = vsel %vm658, %v651, %v655
        %v660 = vand.u32 2147483647, %v596
        %vm661 = vcmp.eq.f32.partialorder %v660, 8.507059e+37
        %v662 = vand.u32 %v596, 2147483648
        %v663 = vor.u32 1.1754944e-38, %v662
        %v664 = vsel %vm661, %v663, %v659
        %v665 = vrcp.pop %v597
        %v666 = vmul.f32 %v597, %v665
        %v667 = vsub.f32 1.0, %v666
        %v668 = vmul.f32 %v665, %v667
        %v669 = vadd.f32 %v665, %v668
        %vm670 = vweird.f32 %v597
        %vm671 = vweird.f32 %v665
        %vm672 = vmor %vm670, %vm671
        %v673 = vsel %vm672, %v665, %v669
        %v674 = vand.u32 2147483647, %v597
        %vm675 = vcmp.eq.f32.partialorder %v674, 8.507059e+37
        %v676 = vand.u32 %v597, 2147483648
        %v677 = vor.u32 1.1754944e-38, %v676
        %v678 = vsel %vm675, %v677, %v673
        %v679 = vrcp.pop %v598
        %v680 = vmul.f32 %v598, %v679
        %v681 = vsub.f32 1.0, %v680
        %v682 = vmul.f32 %v679, %v681
        %v683 = vadd.f32 %v679, %v682
        %vm684 = vweird.f32 %v598
        %vm685 = vweird.f32 %v679
        %vm686 = vmor %vm684, %vm685
        %v687 = vsel %vm686, %v679, %v683
        %v688 = vand.u32 2147483647, %v598
        %vm689 = vcmp.eq.f32.partialorder %v688, 8.507059e+37
        %v690 = vand.u32 %v598, 2147483648
        %v691 = vor.u32 1.1754944e-38, %v690
        %v692 = vsel %vm689, %v691, %v687
        %v693 = vrcp.pop %v599
        %v694 = vmul.f32 %v599, %v693
        %v695 = vsub.f32 1.0, %v694
        %v696 = vmul.f32 %v693, %v695
        %v697 = vadd.f32 %v693, %v696
        %vm698 = vweird.f32 %v599
        %vm699 = vweird.f32 %v693
        %vm700 = vmor %vm698, %vm699
        %v701 = vsel %vm700, %v693, %v697
        %v702 = vand.u32 2147483647, %v599
        %vm703 = vcmp.eq.f32.partialorder %v702, 8.507059e+37
        %v704 = vand.u32 %v599, 2147483648
        %v705 = vor.u32 1.1754944e-38, %v704
        %v706 = vsel %vm703, %v705, %v701
        %v707 = vrcp.pop %v600
        %v708 = vmul.f32 %v600, %v707
        %v709 = vsub.f32 1.0, %v708
        %v710 = vmul.f32 %v707, %v709
        %v711 = vadd.f32 %v707, %v710
        %vm712 = vweird.f32 %v600
        %vm713 = vweird.f32 %v707
        %vm714 = vmor %vm712, %vm713
        %v715 = vsel %vm714, %v707, %v711
        %v716 = vand.u32 2147483647, %v600
        %vm717 = vcmp.eq.f32.partialorder %v716, 8.507059e+37
        %v718 = vand.u32 %v600, 2147483648
        %v719 = vor.u32 1.1754944e-38, %v718
        %v720 = vsel %vm717, %v719, %v715
        %v721 = vrcp.pop %v601
        %v722 = vmul.f32 %v601, %v721
        %v723 = vsub.f32 1.0, %v722
        %v724 = vmul.f32 %v721, %v723
        %v725 = vadd.f32 %v721, %v724
        %vm726 = vweird.f32 %v601
        %vm727 = vweird.f32 %v721
        %vm728 = vmor %vm726, %vm727
        %v729 = vsel %vm728, %v721, %v725
        %v730 = vand.u32 2147483647, %v601
        %vm731 = vcmp.eq.f32.partialorder %v730, 8.507059e+37
        %v732 = vand.u32 %v601, 2147483648
        %v733 = vor.u32 1.1754944e-38, %v732
        %v734 = vsel %vm731, %v733, %v729
        %v735 = vrcp.pop %v602
        %v736 = vmul.f32 %v602, %v735
        %v737 = vsub.f32 1.0, %v736
        %v738 = vmul.f32 %v735, %v737
        %v739 = vadd.f32 %v735, %v738
        %vm740 = vweird.f32 %v602
        %vm741 = vweird.f32 %v735
        %vm742 = vmor %vm740, %vm741
        %v743 = vsel %vm742, %v735, %v739
        %v744 = vand.u32 2147483647, %v602
        %vm745 = vcmp.eq.f32.partialorder %v744, 8.507059e+37
        %v746 = vand.u32 %v602, 2147483648
        %v747 = vor.u32 1.1754944e-38, %v746
        %v748 = vsel %vm745, %v747, %v743
        %v749 = vrcp.pop %v603
        %v750 = vmul.f32 %v603, %v749
        %v751 = vsub.f32 1.0, %v750
        %v752 = vmul.f32 %v749, %v751
        %v753 = vadd.f32 %v749, %v752
        %vm754 = vweird.f32 %v603
        %vm755 = vweird.f32 %v749
        %vm756 = vmor %vm754, %vm755
        %v757 = vsel %vm756, %v749, %v753
        %v758 = vand.u32 2147483647, %v603
        %vm759 = vcmp.eq.f32.partialorder %v758, 8.507059e+37
        %v760 = vand.u32 %v603, 2147483648
        %v761 = vor.u32 1.1754944e-38, %v760
        %v762 = vsel %vm759, %v761, %v757
        %v763 = vrcp.pop %v604
        %v764 = vmul.f32 %v604, %v763
        %v765 = vsub.f32 1.0, %v764
        %v766 = vmul.f32 %v763, %v765
        %v767 = vadd.f32 %v763, %v766
        %vm768 = vweird.f32 %v604
        %vm769 = vweird.f32 %v763
        %vm770 = vmor %vm768, %vm769
        %v771 = vsel %vm770, %v763, %v767
        %v772 = vand.u32 2147483647, %v604
        %vm773 = vcmp.eq.f32.partialorder %v772, 8.507059e+37
        %v774 = vand.u32 %v604, 2147483648
        %v775 = vor.u32 1.1754944e-38, %v774
        %v776 = vsel %vm773, %v775, %v771
        %v777 = vrcp.pop %v605
        %v778 = vmul.f32 %v605, %v777
        %v779 = vsub.f32 1.0, %v778
        %v780 = vmul.f32 %v777, %v779
        %v781 = vadd.f32 %v777, %v780
        %vm782 = vweird.f32 %v605
        %vm783 = vweird.f32 %v777
        %vm784 = vmor %vm782, %vm783
        %v785 = vsel %vm784, %v777, %v781
        %v786 = vand.u32 2147483647, %v605
        %vm787 = vcmp.eq.f32.partialorder %v786, 8.507059e+37
        %v788 = vand.u32 %v605, 2147483648
        %v789 = vor.u32 1.1754944e-38, %v788
        %v790 = vsel %vm787, %v789, %v785
        %v791 = vrcp.pop %v606
        %v792 = vmul.f32 %v606, %v791
        %v793 = vsub.f32 1.0, %v792
        %v794 = vmul.f32 %v791, %v793
        %v795 = vadd.f32 %v791, %v794
        %vm796 = vweird.f32 %v606
        %vm797 = vweird.f32 %v791
        %vm798 = vmor %vm796, %vm797
        %v799 = vsel %vm798, %v791, %v795
        %v800 = vand.u32 2147483647, %v606
        %vm801 = vcmp.eq.f32.partialorder %v800, 8.507059e+37
        %v802 = vand.u32 %v606, 2147483648
        %v803 = vor.u32 1.1754944e-38, %v802
        %v804 = vsel %vm801, %v803, %v799
        %v805 = vrcp.pop %v607
        %v806 = vmul.f32 %v607, %v805
        %v807 = vsub.f32 1.0, %v806
        %v808 = vmul.f32 %v805, %v807
        %v809 = vadd.f32 %v805, %v808
        %vm810 = vweird.f32 %v607
        %vm811 = vweird.f32 %v805
        %vm812 = vmor %vm810, %vm811
        %v813 = vsel %vm812, %v805, %v809
        %v814 = vand.u32 2147483647, %v607
        %vm815 = vcmp.eq.f32.partialorder %v814, 8.507059e+37
        %v816 = vand.u32 %v607, 2147483648
        %v817 = vor.u32 1.1754944e-38, %v816
        %v818 = vsel %vm815, %v817, %v813
        %v819 = vrcp.pop %v608
        %v820 = vmul.f32 %v608, %v819
        %v821 = vsub.f32 1.0, %v820
        %v822 = vmul.f32 %v819, %v821
        %v823 = vadd.f32 %v819, %v822
        %vm824 = vweird.f32 %v608
        %vm825 = vweird.f32 %v819
        %vm826 = vmor %vm824, %vm825
        %v827 = vsel %vm826, %v819, %v823
        %v828 = vand.u32 2147483647, %v608
        %vm829 = vcmp.eq.f32.partialorder %v828, 8.507059e+37
        %v830 = vand.u32 %v608, 2147483648
        %v831 = vor.u32 1.1754944e-38, %v830
        %v832 = vsel %vm829, %v831, %v827
        %v833 = vmul.f32 %v577, %v622
        %v834 = vmul.f32 %v578, %v636
        %v835 = vmul.f32 %v579, %v650
        %v836 = vmul.f32 %v580, %v664
        %v837 = vmul.f32 %v581, %v678
        %v838 = vmul.f32 %v582, %v692
        %v839 = vmul.f32 %v583, %v706
        %v840 = vmul.f32 %v584, %v720
        %v841 = vmul.f32 %v585, %v734
        %v842 = vmul.f32 %v586, %v748
        %v843 = vmul.f32 %v587, %v762
        %v844 = vmul.f32 %v588, %v776
        %v845 = vmul.f32 %v589, %v790
        %v846 = vmul.f32 %v590, %v804
        %v847 = vmul.f32 %v591, %v818
        %v848 = vmul.f32 %v592, %v832
        %v849 = vlog2.pop %v833
        %v850 = vmul.f32 %v849, 0.6931472
        %v851 = vlog2.pop %v834
        %v852 = vmul.f32 %v851, 0.6931472
        %v853 = vlog2.pop %v835
        %v854 = vmul.f32 %v853, 0.6931472
        %v855 = vlog2.pop %v836
        %v856 = vmul.f32 %v855, 0.6931472
        %v857 = vlog2.pop %v837
        %v858 = vmul.f32 %v857, 0.6931472
        %v859 = vlog2.pop %v838
        %v860 = vmul.f32 %v859, 0.6931472
        %v861 = vlog2.pop %v839
        %v862 = vmul.f32 %v861, 0.6931472
        %v863 = vlog2.pop %v840
        %v864 = vmul.f32 %v863, 0.6931472
        %v865 = vlog2.pop %v841
        %v866 = vmul.f32 %v865, 0.6931472
        %v867 = vlog2.pop %v842
        %v868 = vmul.f32 %v867, 0.6931472
        %v869 = vlog2.pop %v843
        %v870 = vmul.f32 %v869, 0.6931472
        %v871 = vlog2.pop %v844
        %v872 = vmul.f32 %v871, 0.6931472
        %v873 = vlog2.pop %v845
        %v874 = vmul.f32 %v873, 0.6931472
        %v875 = vlog2.pop %v846
        %v876 = vmul.f32 %v875, 0.6931472
        %v877 = vlog2.pop %v847
        %v878 = vmul.f32 %v877, 0.6931472
        %v879 = vlog2.pop %v848
        %v880 = vmul.f32 %v879, 0.6931472
        %v881 = vld [vmem:[%s542] sm:$0xff]
        %v882 = vld [vmem:[%s542 + $0x8] sm:$0xff]
        %v883 = vld [vmem:[%s542 + $0x10] sm:$0xff]
        %v884 = vld [vmem:[%s542 + $0x18] sm:$0xff]
        %v885 = vld [vmem:[%s542 + $0x20] sm:$0xff]
        %v886 = vld [vmem:[%s542 + $0x28] sm:$0xff]
        %v887 = vld [vmem:[%s542 + $0x30] sm:$0xff]
        %v888 = vld [vmem:[%s542 + $0x38] sm:$0xff]
        %v889 = vld [vmem:[%s542 + $0x40] sm:$0xff]
        %v890 = vld [vmem:[%s542 + $0x48] sm:$0xff]
        %v891 = vld [vmem:[%s542 + $0x50] sm:$0xff]
        %v892 = vld [vmem:[%s542 + $0x58] sm:$0xff]
        %v893 = vld [vmem:[%s542 + $0x60] sm:$0xff]
        %v894 = vld [vmem:[%s542 + $0x68] sm:$0xff]
        %v895 = vld [vmem:[%s542 + $0x70] sm:$0xff]
        %v896 = vld [vmem:[%s542 + $0x78] sm:$0xff]
        %v897 = vld [vmem:[%s2] sm:$0xff]
        %v898 = vld [vmem:[%s2 + $0x8] sm:$0xff]
        %vm899 = vcmask 130048
        %v901 = vsel %vm899, %v881, 0
        %v904 = vsel %vm899, %v882, 0
        %v907 = vsel %vm899, %v883, 0
        %v910 = vsel %vm899, %v884, 0
        %v913 = vsel %vm899, %v885, 0
        %v916 = vsel %vm899, %v886, 0
        %v919 = vsel %vm899, %v887, 0
        %v922 = vsel %vm899, %v888, 0
        %v925 = vsel %vm899, %v889, 0
        %v928 = vsel %vm899, %v890, 0
        %v931 = vsel %vm899, %v891, 0
        %v934 = vsel %vm899, %v892, 0
        %v937 = vsel %vm899, %v893, 0
        %v940 = vsel %vm899, %v894, 0
        %v943 = vsel %vm899, %v895, 0
        %v946 = vsel %vm899, %v896, 0
        %948 = vmatpush.msra.mxu0 0.0
        %949 = vmatpush.msra.mxu0 0.0
        %950 = vmatpush.msra.mxu0 0.0
        %951 = vmatpush.msra.mxu0 0.0
        %952 = vmatpush.msra.mxu0 0.0
        %953 = vmatpush.msra.mxu0 0.0
        %954 = vmatpush.msra.mxu0 0.0
        %955 = vmatpush.msra.mxu0 0.0
        %956 = vmatpush.msra.mxu0 0.0
        %957 = vmatpush.msra.mxu0 0.0
        %958 = vmatpush.msra.mxu0 0.0
        %959 = vmatpush.msra.mxu0 0.0
        %960 = vmatpush.msra.mxu0 0.0
        %961 = vmatpush.msra.mxu0 0.0
        %962 = vmatpush.msra.mxu0 %v898
        %963 = vmatpush.msra.mxu0 %v897
        %964 = vmatmul.f32.gmra.mxu0 %v901
        %v965 = vpop.f32.mrf.mxu0
        %v966 = vadd.f32 0.0, %v965
        %967 = vmatmul.f32.gmra.mxu0 %v904
        %v968 = vpop.f32.mrf.mxu0
        %v969 = vadd.f32 0.0, %v968
        %970 = vmatmul.f32.gmra.mxu0 %v907
        %v971 = vpop.f32.mrf.mxu0
        %v972 = vadd.f32 0.0, %v971
        %973 = vmatmul.f32.gmra.mxu0 %v910
        %v974 = vpop.f32.mrf.mxu0
        %v975 = vadd.f32 0.0, %v974
        %976 = vmatmul.f32.gmra.mxu0 %v913
        %v977 = vpop.f32.mrf.mxu0
        %v978 = vadd.f32 0.0, %v977
        %979 = vmatmul.f32.gmra.mxu0 %v916
        %v980 = vpop.f32.mrf.mxu0
        %v981 = vadd.f32 0.0, %v980
        %982 = vmatmul.f32.gmra.mxu0 %v919
        %v983 = vpop.f32.mrf.mxu0
        %v984 = vadd.f32 0.0, %v983
        %985 = vmatmul.f32.gmra.mxu0 %v922
        %v986 = vpop.f32.mrf.mxu0
        %v987 = vadd.f32 0.0, %v986
        %988 = vmatmul.f32.gmra.mxu0 %v925
        %v989 = vpop.f32.mrf.mxu0
        %v990 = vadd.f32 0.0, %v989
        %991 = vmatmul.f32.gmra.mxu0 %v928
        %v992 = vpop.f32.mrf.mxu0
        %v993 = vadd.f32 0.0, %v992
        %994 = vmatmul.f32.gmra.mxu0 %v931
        %v995 = vpop.f32.mrf.mxu0
        %v996 = vadd.f32 0.0, %v995
        %997 = vmatmul.f32.gmra.mxu0 %v934
        %v998 = vpop.f32.mrf.mxu0
        %v999 = vadd.f32 0.0, %v998
        %1000 = vmatmul.f32.gmra.mxu0 %v937
        %v1001 = vpop.f32.mrf.mxu0
        %v1002 = vadd.f32 0.0, %v1001
        %1003 = vmatmul.f32.gmra.mxu0 %v940
        %v1004 = vpop.f32.mrf.mxu0
        %v1005 = vadd.f32 0.0, %v1004
        %1006 = vmatmul.f32.gmra.mxu0 %v943
        %v1007 = vpop.f32.mrf.mxu0
        %v1008 = vadd.f32 0.0, %v1007
        %1009 = vmatmul.f32.gmra.mxu0 %v946
        %v1010 = vpop.f32.mrf.mxu0
        %v1011 = vadd.f32 0.0, %v1010
        %1012 = vdwg.mxu0
        %v1013 = vld [vmem:[%s3] sm:$0x1]
        %v1015 = vperm.slane %v1013, 0
        %vm1017 = vcmp.gt.f32.partialorder %v966, %v1015
        %vm1018 = vcmp.gt.f32.partialorder %v969, %v1015
        %vm1019 = vcmp.gt.f32.partialorder %v972, %v1015
        %vm1020 = vcmp.gt.f32.partialorder %v975, %v1015
        %vm1021 = vcmp.gt.f32.partialorder %v978, %v1015
        %vm1022 = vcmp.gt.f32.partialorder %v981, %v1015
        %vm1023 = vcmp.gt.f32.partialorder %v984, %v1015
        %vm1024 = vcmp.gt.f32.partialorder %v987, %v1015
        %vm1025 = vcmp.gt.f32.partialorder %v990, %v1015
        %vm1026 = vcmp.gt.f32.partialorder %v993, %v1015
        %vm1027 = vcmp.gt.f32.partialorder %v996, %v1015
        %vm1028 = vcmp.gt.f32.partialorder %v999, %v1015
        %vm1029 = vcmp.gt.f32.partialorder %v1002, %v1015
        %vm1030 = vcmp.gt.f32.partialorder %v1005, %v1015
        %vm1031 = vcmp.gt.f32.partialorder %v1008, %v1015
        %vm1032 = vcmp.gt.f32.partialorder %v1011, %v1015
        %v1033 = vsel %vm1017, 1, 0
        %v1034 = vsel %vm1018, 1, 0
        %v1035 = vsel %vm1019, 1, 0
        %v1036 = vsel %vm1020, 1, 0
        %v1037 = vsel %vm1021, 1, 0
        %v1038 = vsel %vm1022, 1, 0
        %v1039 = vsel %vm1023, 1, 0
        %v1040 = vsel %vm1024, 1, 0
        %v1041 = vsel %vm1025, 1, 0
        %v1042 = vsel %vm1026, 1, 0
        %v1043 = vsel %vm1027, 1, 0
        %v1044 = vsel %vm1028, 1, 0
        %v1045 = vsel %vm1029, 1, 0
        %v1046 = vsel %vm1030, 1, 0
        %v1047 = vsel %vm1031, 1, 0
        %v1048 = vsel %vm1032, 1, 0
        %v1049 = vcvt.s32.f32 %v1033
        %v1050 = vcvt.s32.f32 %v1034
        %v1051 = vcvt.s32.f32 %v1035
        %v1052 = vcvt.s32.f32 %v1036
        %v1053 = vcvt.s32.f32 %v1037
        %v1054 = vcvt.s32.f32 %v1038
        %v1055 = vcvt.s32.f32 %v1039
        %v1056 = vcvt.s32.f32 %v1040
        %v1057 = vcvt.s32.f32 %v1041
        %v1058 = vcvt.s32.f32 %v1042
        %v1059 = vcvt.s32.f32 %v1043
        %v1060 = vcvt.s32.f32 %v1044
        %v1061 = vcvt.s32.f32 %v1045
        %v1062 = vcvt.s32.f32 %v1046
        %v1063 = vcvt.s32.f32 %v1047
        %v1064 = vcvt.s32.f32 %v1048
        %v1065 = vld [vmem:[%s4] sm:$0xff]
        %v1066 = vld [vmem:[%s4 + $0x8] sm:$0xff]
        %v1067 = vld [vmem:[%s4 + $0x10] sm:$0xff]
        %v1068 = vld [vmem:[%s4 + $0x18] sm:$0xff]
        %v1069 = vld [vmem:[%s4 + $0x20] sm:$0xff]
        %v1070 = vld [vmem:[%s4 + $0x28] sm:$0xff]
        %v1071 = vld [vmem:[%s4 + $0x30] sm:$0xff]
        %v1072 = vld [vmem:[%s4 + $0x38] sm:$0xff]
        %v1073 = vld [vmem:[%s4 + $0x40] sm:$0xff]
        %v1074 = vld [vmem:[%s4 + $0x48] sm:$0xff]
        %v1075 = vld [vmem:[%s4 + $0x50] sm:$0xff]
        %v1076 = vld [vmem:[%s4 + $0x58] sm:$0xff]
        %vm1077 = vcmask 785408
        %v1079 = vsel %vm1077, %v1049, 0
        %v1082 = vsel %vm1077, %v1050, 0
        %v1085 = vsel %vm1077, %v1051, 0
        %v1088 = vsel %vm1077, %v1052, 0
        %v1091 = vsel %vm1077, %v1053, 0
        %v1094 = vsel %vm1077, %v1054, 0
        %v1097 = vsel %vm1077, %v1055, 0
        %v1100 = vsel %vm1077, %v1056, 0
        %v1103 = vsel %vm1077, %v1057, 0
        %v1106 = vsel %vm1077, %v1058, 0
        %v1109 = vsel %vm1077, %v1059, 0
        %v1112 = vsel %vm1077, %v1060, 0
        %v1115 = vsel %vm1077, %v1061, 0
        %v1118 = vsel %vm1077, %v1062, 0
        %v1121 = vsel %vm1077, %v1063, 0
        %v1124 = vsel %vm1077, %v1064, 0
        %1126 = vmatpush.msra.mxu0 0.0
        %1127 = vmatpush.msra.mxu0 0.0
        %1128 = vmatpush.msra.mxu0 0.0
        %1129 = vmatpush.msra.mxu0 0.0
        %1130 = vmatpush.msra.mxu0 %v1076
        %1131 = vmatpush.msra.mxu0 %v1075
        %1132 = vmatpush.msra.mxu0 %v1074
        %1133 = vmatpush.msra.mxu0 %v1073
        %1134 = vmatpush.msra.mxu0 %v1072
        %1135 = vmatpush.msra.mxu0 %v1071
        %1136 = vmatpush.msra.mxu0 %v1070
        %1137 = vmatpush.msra.mxu0 %v1069
        %1138 = vmatpush.msra.mxu0 %v1068
        %1139 = vmatpush.msra.mxu0 %v1067
        %1140 = vmatpush.msra.mxu0 %v1066
        %1141 = vmatpush.msra.mxu0 %v1065
        %1142 = vmatmul.f32.gmra.mxu0 %v1079
        %v1143 = vpop.f32.mrf.mxu0
        %v1144 = vadd.f32 0.0, %v1143
        %1145 = vmatmul.f32.gmra.mxu0 %v1082
        %v1146 = vpop.f32.mrf.mxu0
        %v1147 = vadd.f32 0.0, %v1146
        %1148 = vmatmul.f32.gmra.mxu0 %v1085
        %v1149 = vpop.f32.mrf.mxu0
        %v1150 = vadd.f32 0.0, %v1149
        %1151 = vmatmul.f32.gmra.mxu0 %v1088
        %v1152 = vpop.f32.mrf.mxu0
        %v1153 = vadd.f32 0.0, %v1152
        %1154 = vmatmul.f32.gmra.mxu0 %v1091
        %v1155 = vpop.f32.mrf.mxu0
        %v1156 = vadd.f32 0.0, %v1155
        %1157 = vmatmul.f32.gmra.mxu0 %v1094
        %v1158 = vpop.f32.mrf.mxu0
        %v1159 = vadd.f32 0.0, %v1158
        %1160 = vmatmul.f32.gmra.mxu0 %v1097
        %v1161 = vpop.f32.mrf.mxu0
        %v1162 = vadd.f32 0.0, %v1161
        %1163 = vmatmul.f32.gmra.mxu0 %v1100
        %v1164 = vpop.f32.mrf.mxu0
        %v1165 = vadd.f32 0.0, %v1164
        %1166 = vmatmul.f32.gmra.mxu0 %v1103
        %v1167 = vpop.f32.mrf.mxu0
        %v1168 = vadd.f32 0.0, %v1167
        %1169 = vmatmul.f32.gmra.mxu0 %v1106
        %v1170 = vpop.f32.mrf.mxu0
        %v1171 = vadd.f32 0.0, %v1170
        %1172 = vmatmul.f32.gmra.mxu0 %v1109
        %v1173 = vpop.f32.mrf.mxu0
        %v1174 = vadd.f32 0.0, %v1173
        %1175 = vmatmul.f32.gmra.mxu0 %v1112
        %v1176 = vpop.f32.mrf.mxu0
        %v1177 = vadd.f32 0.0, %v1176
        %1178 = vmatmul.f32.gmra.mxu0 %v1115
        %v1179 = vpop.f32.mrf.mxu0
        %v1180 = vadd.f32 0.0, %v1179
        %1181 = vmatmul.f32.gmra.mxu0 %v1118
        %v1182 = vpop.f32.mrf.mxu0
        %v1183 = vadd.f32 0.0, %v1182
        %1184 = vmatmul.f32.gmra.mxu0 %v1121
        %v1185 = vpop.f32.mrf.mxu0
        %v1186 = vadd.f32 0.0, %v1185
        %1187 = vmatmul.f32.gmra.mxu0 %v1124
        %v1188 = vpop.f32.mrf.mxu0
        %v1189 = vadd.f32 0.0, %v1188
        %1190 = vdwg.mxu0
        %v1191 = vld [vmem:[%s5] sm:$0xff]
        %v1192 = vld [vmem:[%s5 + $0x8] sm:$0xff]
        %v1193 = vld [vmem:[%s5 + $0x10] sm:$0xff]
        %v1194 = vld [vmem:[%s5 + $0x18] sm:$0xff]
        %v1195 = vld [vmem:[%s5 + $0x20] sm:$0xff]
        %v1196 = vld [vmem:[%s5 + $0x28] sm:$0xff]
        %v1197 = vld [vmem:[%s5 + $0x30] sm:$0xff]
        %v1198 = vld [vmem:[%s5 + $0x38] sm:$0xff]
        %vm1199 = vcmask 261120
        %v1201 = vsel %vm1199, %v1144, 0
        %v1204 = vsel %vm1199, %v1147, 0
        %v1207 = vsel %vm1199, %v1150, 0
        %v1210 = vsel %vm1199, %v1153, 0
        %v1213 = vsel %vm1199, %v1156, 0
        %v1216 = vsel %vm1199, %v1159, 0
        %v1219 = vsel %vm1199, %v1162, 0
        %v1222 = vsel %vm1199, %v1165, 0
        %v1225 = vsel %vm1199, %v1168, 0
        %v1228 = vsel %vm1199, %v1171, 0
        %v1231 = vsel %vm1199, %v1174, 0
        %v1234 = vsel %vm1199, %v1177, 0
        %v1237 = vsel %vm1199, %v1180, 0
        %v1240 = vsel %vm1199, %v1183, 0
        %v1243 = vsel %vm1199, %v1186, 0
        %v1246 = vsel %vm1199, %v1189, 0
        %1248 = vmatpush.msra.mxu0 0.0
        %1249 = vmatpush.msra.mxu0 0.0
        %1250 = vmatpush.msra.mxu0 0.0
        %1251 = vmatpush.msra.mxu0 0.0
        %1252 = vmatpush.msra.mxu0 0.0
        %1253 = vmatpush.msra.mxu0 0.0
        %1254 = vmatpush.msra.mxu0 0.0
        %1255 = vmatpush.msra.mxu0 0.0
        %1256 = vmatpush.msra.mxu0 0.0
        %1257 = vmatpush.msra.mxu0 0.0
        %1258 = vmatpush.msra.mxu0 0.0
        %1259 = vmatpush.msra.mxu0 0.0
        %1260 = vmatpush.msra.mxu0 %v1197
        %1261 = vmatpush.msra.mxu0 %v1195
        %1262 = vmatpush.msra.mxu0 %v1193
        %1263 = vmatpush.msra.mxu0 %v1191
        %1264 = vmatmul.f32.gmra.mxu0 %v1201
        %v1265 = vpop.f32.mrf.mxu0
        %v1266 = vadd.f32 0.0, %v1265
        %1267 = vmatmul.f32.gmra.mxu0 %v1204
        %v1268 = vpop.f32.mrf.mxu0
        %v1269 = vadd.f32 0.0, %v1268
        %1270 = vmatmul.f32.gmra.mxu0 %v1207
        %v1271 = vpop.f32.mrf.mxu0
        %v1272 = vadd.f32 0.0, %v1271
        %1273 = vmatmul.f32.gmra.mxu0 %v1210
        %v1274 = vpop.f32.mrf.mxu0
        %v1275 = vadd.f32 0.0, %v1274
        %1276 = vmatmul.f32.gmra.mxu0 %v1213
        %v1277 = vpop.f32.mrf.mxu0
        %v1278 = vadd.f32 0.0, %v1277
        %1279 = vmatmul.f32.gmra.mxu0 %v1216
        %v1280 = vpop.f32.mrf.mxu0
        %v1281 = vadd.f32 0.0, %v1280
        %1282 = vmatmul.f32.gmra.mxu0 %v1219
        %v1283 = vpop.f32.mrf.mxu0
        %v1284 = vadd.f32 0.0, %v1283
        %1285 = vmatmul.f32.gmra.mxu0 %v1222
        %v1286 = vpop.f32.mrf.mxu0
        %v1287 = vadd.f32 0.0, %v1286
        %1288 = vmatmul.f32.gmra.mxu0 %v1225
        %v1289 = vpop.f32.mrf.mxu0
        %v1290 = vadd.f32 0.0, %v1289
        %1291 = vmatmul.f32.gmra.mxu0 %v1228
        %v1292 = vpop.f32.mrf.mxu0
        %v1293 = vadd.f32 0.0, %v1292
        %1294 = vmatmul.f32.gmra.mxu0 %v1231
        %v1295 = vpop.f32.mrf.mxu0
        %v1296 = vadd.f32 0.0, %v1295
        %1297 = vmatmul.f32.gmra.mxu0 %v1234
        %v1298 = vpop.f32.mrf.mxu0
        %v1299 = vadd.f32 0.0, %v1298
        %1300 = vmatmul.f32.gmra.mxu0 %v1237
        %v1301 = vpop.f32.mrf.mxu0
        %v1302 = vadd.f32 0.0, %v1301
        %1303 = vmatmul.f32.gmra.mxu0 %v1240
        %v1304 = vpop.f32.mrf.mxu0
        %v1305 = vadd.f32 0.0, %v1304
        %1306 = vmatmul.f32.gmra.mxu0 %v1243
        %v1307 = vpop.f32.mrf.mxu0
        %v1308 = vadd.f32 0.0, %v1307
        %1309 = vmatmul.f32.gmra.mxu0 %v1246
        %v1310 = vpop.f32.mrf.mxu0
        %v1311 = vadd.f32 0.0, %v1310
        %1312 = vdwg.mxu0
        %1313 = vmatpush.msra.mxu0 0.0
        %1314 = vmatpush.msra.mxu0 0.0
        %1315 = vmatpush.msra.mxu0 0.0
        %1316 = vmatpush.msra.mxu0 0.0
        %1317 = vmatpush.msra.mxu0 0.0
        %1318 = vmatpush.msra.mxu0 0.0
        %1319 = vmatpush.msra.mxu0 0.0
        %1320 = vmatpush.msra.mxu0 0.0
        %1321 = vmatpush.msra.mxu0 0.0
        %1322 = vmatpush.msra.mxu0 0.0
        %1323 = vmatpush.msra.mxu0 0.0
        %1324 = vmatpush.msra.mxu0 0.0
        %1325 = vmatpush.msra.mxu0 %v1198
        %1326 = vmatpush.msra.mxu0 %v1196
        %1327 = vmatpush.msra.mxu0 %v1194
        %1328 = vmatpush.msra.mxu0 %v1192
        %1329 = vmatmul.f32.gmra.mxu0 %v1201
        %v1330 = vpop.f32.mrf.mxu0
        %v1331 = vadd.f32 0.0, %v1330
        %1332 = vmatmul.f32.gmra.mxu0 %v1204
        %v1333 = vpop.f32.mrf.mxu0
        %v1334 = vadd.f32 0.0, %v1333
        %1335 = vmatmul.f32.gmra.mxu0 %v1207
        %v1336 = vpop.f32.mrf.mxu0
        %v1337 = vadd.f32 0.0, %v1336
        %1338 = vmatmul.f32.gmra.mxu0 %v1210
        %v1339 = vpop.f32.mrf.mxu0
        %v1340 = vadd.f32 0.0, %v1339
        %1341 = vmatmul.f32.gmra.mxu0 %v1213
        %v1342 = vpop.f32.mrf.mxu0
        %v1343 = vadd.f32 0.0, %v1342
        %1344 = vmatmul.f32.gmra.mxu0 %v1216
        %v1345 = vpop.f32.mrf.mxu0
        %v1346 = vadd.f32 0.0, %v1345
        %1347 = vmatmul.f32.gmra.mxu0 %v1219
        %v1348 = vpop.f32.mrf.mxu0
        %v1349 = vadd.f32 0.0, %v1348
        %1350 = vmatmul.f32.gmra.mxu0 %v1222
        %v1351 = vpop.f32.mrf.mxu0
        %v1352 = vadd.f32 0.0, %v1351
        %1353 = vmatmul.f32.gmra.mxu0 %v1225
        %v1354 = vpop.f32.mrf.mxu0
        %v1355 = vadd.f32 0.0, %v1354
        %1356 = vmatmul.f32.gmra.mxu0 %v1228
        %v1357 = vpop.f32.mrf.mxu0
        %v1358 = vadd.f32 0.0, %v1357
        %1359 = vmatmul.f32.gmra.mxu0 %v1231
        %v1360 = vpop.f32.mrf.mxu0
        %v1361 = vadd.f32 0.0, %v1360
        %1362 = vmatmul.f32.gmra.mxu0 %v1234
        %v1363 = vpop.f32.mrf.mxu0
        %v1364 = vadd.f32 0.0, %v1363
        %1365 = vmatmul.f32.gmra.mxu0 %v1237
        %v1366 = vpop.f32.mrf.mxu0
        %v1367 = vadd.f32 0.0, %v1366
        %1368 = vmatmul.f32.gmra.mxu0 %v1240
        %v1369 = vpop.f32.mrf.mxu0
        %v1370 = vadd.f32 0.0, %v1369
        %1371 = vmatmul.f32.gmra.mxu0 %v1243
        %v1372 = vpop.f32.mrf.mxu0
        %v1373 = vadd.f32 0.0, %v1372
        %1374 = vmatmul.f32.gmra.mxu0 %v1246
        %v1375 = vpop.f32.mrf.mxu0
        %v1376 = vadd.f32 0.0, %v1375
        %1377 = vdwg.mxu0
        %v1378 = vld [vmem:[%s6] sm:$0x3]
        %v1380 = vperm.slane %v1378, 0
        %v1381 = vperm.slane %v1378, 1
        %v1384 = vsub.f32 %v1266, %v1380
        %v1385 = vsub.f32 %v1331, %v1381
        %v1386 = vsub.f32 %v1269, %v1380
        %v1387 = vsub.f32 %v1334, %v1381
        %v1388 = vsub.f32 %v1272, %v1380
        %v1389 = vsub.f32 %v1337, %v1381
        %v1390 = vsub.f32 %v1275, %v1380
        %v1391 = vsub.f32 %v1340, %v1381
        %v1392 = vsub.f32 %v1278, %v1380
        %v1393 = vsub.f32 %v1343, %v1381
        %v1394 = vsub.f32 %v1281, %v1380
        %v1395 = vsub.f32 %v1346, %v1381
        %v1396 = vsub.f32 %v1284, %v1380
        %v1397 = vsub.f32 %v1349, %v1381
        %v1398 = vsub.f32 %v1287, %v1380
        %v1399 = vsub.f32 %v1352, %v1381
        %v1400 = vsub.f32 %v1290, %v1380
        %v1401 = vsub.f32 %v1355, %v1381
        %v1402 = vsub.f32 %v1293, %v1380
        %v1403 = vsub.f32 %v1358, %v1381
        %v1404 = vsub.f32 %v1296, %v1380
        %v1405 = vsub.f32 %v1361, %v1381
        %v1406 = vsub.f32 %v1299, %v1380
        %v1407 = vsub.f32 %v1364, %v1381
        %v1408 = vsub.f32 %v1302, %v1380
        %v1409 = vsub.f32 %v1367, %v1381
        %v1410 = vsub.f32 %v1305, %v1380
        %v1411 = vsub.f32 %v1370, %v1381
        %v1412 = vsub.f32 %v1308, %v1380
        %v1413 = vsub.f32 %v1373, %v1381
        %v1414 = vsub.f32 %v1311, %v1380
        %v1415 = vsub.f32 %v1376, %v1381
        %v1416 = vand.u32 2147483647, %v1384
        %v1417 = vand.u32 2147483647, %v1385
        %v1418 = vand.u32 2147483647, %v1386
        %v1419 = vand.u32 2147483647, %v1387
        %v1420 = vand.u32 2147483647, %v1388
        %v1421 = vand.u32 2147483647, %v1389
        %v1422 = vand.u32 2147483647, %v1390
        %v1423 = vand.u32 2147483647, %v1391
        %v1424 = vand.u32 2147483647, %v1392
        %v1425 = vand.u32 2147483647, %v1393
        %v1426 = vand.u32 2147483647, %v1394
        %v1427 = vand.u32 2147483647, %v1395
        %v1428 = vand.u32 2147483647, %v1396
        %v1429 = vand.u32 2147483647, %v1397
        %v1430 = vand.u32 2147483647, %v1398
        %v1431 = vand.u32 2147483647, %v1399
        %v1432 = vand.u32 2147483647, %v1400
        %v1433 = vand.u32 2147483647, %v1401
        %v1434 = vand.u32 2147483647, %v1402
        %v1435 = vand.u32 2147483647, %v1403
        %v1436 = vand.u32 2147483647, %v1404
        %v1437 = vand.u32 2147483647, %v1405
        %v1438 = vand.u32 2147483647, %v1406
        %v1439 = vand.u32 2147483647, %v1407
        %v1440 = vand.u32 2147483647, %v1408
        %v1441 = vand.u32 2147483647, %v1409
        %v1442 = vand.u32 2147483647, %v1410
        %v1443 = vand.u32 2147483647, %v1411
        %v1444 = vand.u32 2147483647, %v1412
        %v1445 = vand.u32 2147483647, %v1413
        %v1446 = vand.u32 2147483647, %v1414
        %v1447 = vand.u32 2147483647, %v1415
        %vm1448 = vcmp.lt.f32.partialorder %v1416, 0.5
        %vm1449 = vcmp.lt.f32.partialorder %v1417, 0.5
        %vm1450 = vcmp.lt.f32.partialorder %v1418, 0.5
        %vm1451 = vcmp.lt.f32.partialorder %v1419, 0.5
        %vm1452 = vcmp.lt.f32.partialorder %v1420, 0.5
        %vm1453 = vcmp.lt.f32.partialorder %v1421, 0.5
        %vm1454 = vcmp.lt.f32.partialorder %v1422, 0.5
        %vm1455 = vcmp.lt.f32.partialorder %v1423, 0.5
        %vm1456 = vcmp.lt.f32.partialorder %v1424, 0.5
        %vm1457 = vcmp.lt.f32.partialorder %v1425, 0.5
        %vm1458 = vcmp.lt.f32.partialorder %v1426, 0.5
        %vm1459 = vcmp.lt.f32.partialorder %v1427, 0.5
        %vm1460 = vcmp.lt.f32.partialorder %v1428, 0.5
        %vm1461 = vcmp.lt.f32.partialorder %v1429, 0.5
        %vm1462 = vcmp.lt.f32.partialorder %v1430, 0.5
        %vm1463 = vcmp.lt.f32.partialorder %v1431, 0.5
        %vm1464 = vcmp.lt.f32.partialorder %v1432, 0.5
        %vm1465 = vcmp.lt.f32.partialorder %v1433, 0.5
        %vm1466 = vcmp.lt.f32.partialorder %v1434, 0.5
        %vm1467 = vcmp.lt.f32.partialorder %v1435, 0.5
        %vm1468 = vcmp.lt.f32.partialorder %v1436, 0.5
        %vm1469 = vcmp.lt.f32.partialorder %v1437, 0.5
        %vm1470 = vcmp.lt.f32.partialorder %v1438, 0.5
        %vm1471 = vcmp.lt.f32.partialorder %v1439, 0.5
        %vm1472 = vcmp.lt.f32.partialorder %v1440, 0.5
        %vm1473 = vcmp.lt.f32.partialorder %v1441, 0.5
        %vm1474 = vcmp.lt.f32.partialorder %v1442, 0.5
        %vm1475 = vcmp.lt.f32.partialorder %v1443, 0.5
        %vm1476 = vcmp.lt.f32.partialorder %v1444, 0.5
        %vm1477 = vcmp.lt.f32.partialorder %v1445, 0.5
        %vm1478 = vcmp.lt.f32.partialorder %v1446, 0.5
        %vm1479 = vcmp.lt.f32.partialorder %v1447, 0.5
        %v1480 = vsel %vm1448, 1, 0
        %v1481 = vsel %vm1449, 1, 0
        %v1482 = vsel %vm1450, 1, 0
        %v1483 = vsel %vm1451, 1, 0
        %v1484 = vsel %vm1452, 1, 0
        %v1485 = vsel %vm1453, 1, 0
        %v1486 = vsel %vm1454, 1, 0
        %v1487 = vsel %vm1455, 1, 0
        %v1488 = vsel %vm1456, 1, 0
        %v1489 = vsel %vm1457, 1, 0
        %v1490 = vsel %vm1458, 1, 0
        %v1491 = vsel %vm1459, 1, 0
        %v1492 = vsel %vm1460, 1, 0
        %v1493 = vsel %vm1461, 1, 0
        %v1494 = vsel %vm1462, 1, 0
        %v1495 = vsel %vm1463, 1, 0
        %v1496 = vsel %vm1464, 1, 0
        %v1497 = vsel %vm1465, 1, 0
        %v1498 = vsel %vm1466, 1, 0
        %v1499 = vsel %vm1467, 1, 0
        %v1500 = vsel %vm1468, 1, 0
        %v1501 = vsel %vm1469, 1, 0
        %v1502 = vsel %vm1470, 1, 0
        %v1503 = vsel %vm1471, 1, 0
        %v1504 = vsel %vm1472, 1, 0
        %v1505 = vsel %vm1473, 1, 0
        %v1506 = vsel %vm1474, 1, 0
        %v1507 = vsel %vm1475, 1, 0
        %v1508 = vsel %vm1476, 1, 0
        %v1509 = vsel %vm1477, 1, 0
        %v1510 = vsel %vm1478, 1, 0
        %v1511 = vsel %vm1479, 1, 0
        %v1512 = vcvt.s32.f32 %v1480
        %v1513 = vcvt.s32.f32 %v1481
        %v1514 = vcvt.s32.f32 %v1482
        %v1515 = vcvt.s32.f32 %v1483
        %v1516 = vcvt.s32.f32 %v1484
        %v1517 = vcvt.s32.f32 %v1485
        %v1518 = vcvt.s32.f32 %v1486
        %v1519 = vcvt.s32.f32 %v1487
        %v1520 = vcvt.s32.f32 %v1488
        %v1521 = vcvt.s32.f32 %v1489
        %v1522 = vcvt.s32.f32 %v1490
        %v1523 = vcvt.s32.f32 %v1491
        %v1524 = vcvt.s32.f32 %v1492
        %v1525 = vcvt.s32.f32 %v1493
        %v1526 = vcvt.s32.f32 %v1494
        %v1527 = vcvt.s32.f32 %v1495
        %v1528 = vcvt.s32.f32 %v1496
        %v1529 = vcvt.s32.f32 %v1497
        %v1530 = vcvt.s32.f32 %v1498
        %v1531 = vcvt.s32.f32 %v1499
        %v1532 = vcvt.s32.f32 %v1500
        %v1533 = vcvt.s32.f32 %v1501
        %v1534 = vcvt.s32.f32 %v1502
        %v1535 = vcvt.s32.f32 %v1503
        %v1536 = vcvt.s32.f32 %v1504
        %v1537 = vcvt.s32.f32 %v1505
        %v1538 = vcvt.s32.f32 %v1506
        %v1539 = vcvt.s32.f32 %v1507
        %v1540 = vcvt.s32.f32 %v1508
        %v1541 = vcvt.s32.f32 %v1509
        %v1542 = vcvt.s32.f32 %v1510
        %v1543 = vcvt.s32.f32 %v1511
        %v1544 = vld [vmem:[%s7] sm:$0xff]
        %v1545 = vld [vmem:[%s7 + $0x8] sm:$0xff]
        %v1546 = vld [vmem:[%s7 + $0x10] sm:$0xff]
        %v1547 = vld [vmem:[%s7 + $0x18] sm:$0xff]
        %v1549 = vsel %vm899, %v850, 0
        %v1552 = vsel %vm899, %v852, 0
        %v1555 = vsel %vm899, %v854, 0
        %v1558 = vsel %vm899, %v856, 0
        %v1561 = vsel %vm899, %v858, 0
        %v1564 = vsel %vm899, %v860, 0
        %v1567 = vsel %vm899, %v862, 0
        %v1570 = vsel %vm899, %v864, 0
        %v1573 = vsel %vm899, %v866, 0
        %v1576 = vsel %vm899, %v868, 0
        %v1579 = vsel %vm899, %v870, 0
        %v1582 = vsel %vm899, %v872, 0
        %v1585 = vsel %vm899, %v874, 0
        %v1588 = vsel %vm899, %v876, 0
        %v1591 = vsel %vm899, %v878, 0
        %v1594 = vsel %vm899, %v880, 0
        %1596 = vmatpush.msra.mxu0 0.0
        %1597 = vmatpush.msra.mxu0 0.0
        %1598 = vmatpush.msra.mxu0 0.0
        %1599 = vmatpush.msra.mxu0 0.0
        %1600 = vmatpush.msra.mxu0 0.0
        %1601 = vmatpush.msra.mxu0 0.0
        %1602 = vmatpush.msra.mxu0 0.0
        %1603 = vmatpush.msra.mxu0 0.0
        %1604 = vmatpush.msra.mxu0 0.0
        %1605 = vmatpush.msra.mxu0 0.0
        %1606 = vmatpush.msra.mxu0 0.0
        %1607 = vmatpush.msra.mxu0 0.0
        %1608 = vmatpush.msra.mxu0 0.0
        %1609 = vmatpush.msra.mxu0 0.0
        %1610 = vmatpush.msra.mxu0 %v1546
        %1611 = vmatpush.msra.mxu0 %v1544
        %1612 = vmatmul.f32.gmra.mxu0 %v1549
        %v1613 = vpop.f32.mrf.mxu0
        %v1614 = vadd.f32 0.0, %v1613
        %1615 = vmatmul.f32.gmra.mxu0 %v1552
        %v1616 = vpop.f32.mrf.mxu0
        %v1617 = vadd.f32 0.0, %v1616
        %1618 = vmatmul.f32.gmra.mxu0 %v1555
        %v1619 = vpop.f32.mrf.mxu0
        %v1620 = vadd.f32 0.0, %v1619
        %1621 = vmatmul.f32.gmra.mxu0 %v1558
        %v1622 = vpop.f32.mrf.mxu0
        %v1623 = vadd.f32 0.0, %v1622
        %1624 = vmatmul.f32.gmra.mxu0 %v1561
        %v1625 = vpop.f32.mrf.mxu0
        %v1626 = vadd.f32 0.0, %v1625
        %1627 = vmatmul.f32.gmra.mxu0 %v1564
        %v1628 = vpop.f32.mrf.mxu0
        %v1629 = vadd.f32 0.0, %v1628
        %1630 = vmatmul.f32.gmra.mxu0 %v1567
        %v1631 = vpop.f32.mrf.mxu0
        %v1632 = vadd.f32 0.0, %v1631
        %1633 = vmatmul.f32.gmra.mxu0 %v1570
        %v1634 = vpop.f32.mrf.mxu0
        %v1635 = vadd.f32 0.0, %v1634
        %1636 = vmatmul.f32.gmra.mxu0 %v1573
        %v1637 = vpop.f32.mrf.mxu0
        %v1638 = vadd.f32 0.0, %v1637
        %1639 = vmatmul.f32.gmra.mxu0 %v1576
        %v1640 = vpop.f32.mrf.mxu0
        %v1641 = vadd.f32 0.0, %v1640
        %1642 = vmatmul.f32.gmra.mxu0 %v1579
        %v1643 = vpop.f32.mrf.mxu0
        %v1644 = vadd.f32 0.0, %v1643
        %1645 = vmatmul.f32.gmra.mxu0 %v1582
        %v1646 = vpop.f32.mrf.mxu0
        %v1647 = vadd.f32 0.0, %v1646
        %1648 = vmatmul.f32.gmra.mxu0 %v1585
        %v1649 = vpop.f32.mrf.mxu0
        %v1650 = vadd.f32 0.0, %v1649
        %1651 = vmatmul.f32.gmra.mxu0 %v1588
        %v1652 = vpop.f32.mrf.mxu0
        %v1653 = vadd.f32 0.0, %v1652
        %1654 = vmatmul.f32.gmra.mxu0 %v1591
        %v1655 = vpop.f32.mrf.mxu0
        %v1656 = vadd.f32 0.0, %v1655
        %1657 = vmatmul.f32.gmra.mxu0 %v1594
        %v1658 = vpop.f32.mrf.mxu0
        %v1659 = vadd.f32 0.0, %v1658
        %1660 = vdwg.mxu0
        %1661 = vmatpush.msra.mxu0 0.0
        %1662 = vmatpush.msra.mxu0 0.0
        %1663 = vmatpush.msra.mxu0 0.0
        %1664 = vmatpush.msra.mxu0 0.0
        %1665 = vmatpush.msra.mxu0 0.0
        %1666 = vmatpush.msra.mxu0 0.0
        %1667 = vmatpush.msra.mxu0 0.0
        %1668 = vmatpush.msra.mxu0 0.0
        %1669 = vmatpush.msra.mxu0 0.0
        %1670 = vmatpush.msra.mxu0 0.0
        %1671 = vmatpush.msra.mxu0 0.0
        %1672 = vmatpush.msra.mxu0 0.0
        %1673 = vmatpush.msra.mxu0 0.0
        %1674 = vmatpush.msra.mxu0 0.0
        %1675 = vmatpush.msra.mxu0 %v1547
        %1676 = vmatpush.msra.mxu0 %v1545
        %1677 = vmatmul.f32.gmra.mxu0 %v1549
        %v1678 = vpop.f32.mrf.mxu0
        %v1679 = vadd.f32 0.0, %v1678
        %1680 = vmatmul.f32.gmra.mxu0 %v1552
        %v1681 = vpop.f32.mrf.mxu0
        %v1682 = vadd.f32 0.0, %v1681
        %1683 = vmatmul.f32.gmra.mxu0 %v1555
        %v1684 = vpop.f32.mrf.mxu0
        %v1685 = vadd.f32 0.0, %v1684
        %1686 = vmatmul.f32.gmra.mxu0 %v1558
        %v1687 = vpop.f32.mrf.mxu0
        %v1688 = vadd.f32 0.0, %v1687
        %1689 = vmatmul.f32.gmra.mxu0 %v1561
        %v1690 = vpop.f32.mrf.mxu0
        %v1691 = vadd.f32 0.0, %v1690
        %1692 = vmatmul.f32.gmra.mxu0 %v1564
        %v1693 = vpop.f32.mrf.mxu0
        %v1694 = vadd.f32 0.0, %v1693
        %1695 = vmatmul.f32.gmra.mxu0 %v1567
        %v1696 = vpop.f32.mrf.mxu0
        %v1697 = vadd.f32 0.0, %v1696
        %1698 = vmatmul.f32.gmra.mxu0 %v1570
        %v1699 = vpop.f32.mrf.mxu0
        %v1700 = vadd.f32 0.0, %v1699
        %1701 = vmatmul.f32.gmra.mxu0 %v1573
        %v1702 = vpop.f32.mrf.mxu0
        %v1703 = vadd.f32 0.0, %v1702
        %1704 = vmatmul.f32.gmra.mxu0 %v1576
        %v1705 = vpop.f32.mrf.mxu0
        %v1706 = vadd.f32 0.0, %v1705
        %1707 = vmatmul.f32.gmra.mxu0 %v1579
        %v1708 = vpop.f32.mrf.mxu0
        %v1709 = vadd.f32 0.0, %v1708
        %1710 = vmatmul.f32.gmra.mxu0 %v1582
        %v1711 = vpop.f32.mrf.mxu0
        %v1712 = vadd.f32 0.0, %v1711
        %1713 = vmatmul.f32.gmra.mxu0 %v1585
        %v1714 = vpop.f32.mrf.mxu0
        %v1715 = vadd.f32 0.0, %v1714
        %1716 = vmatmul.f32.gmra.mxu0 %v1588
        %v1717 = vpop.f32.mrf.mxu0
        %v1718 = vadd.f32 0.0, %v1717
        %1719 = vmatmul.f32.gmra.mxu0 %v1591
        %v1720 = vpop.f32.mrf.mxu0
        %v1721 = vadd.f32 0.0, %v1720
        %1722 = vmatmul.f32.gmra.mxu0 %v1594
        %v1723 = vpop.f32.mrf.mxu0
        %v1724 = vadd.f32 0.0, %v1723
        %1725 = vdwg.mxu0
        %v1726 = vmul.f32 %v1614, %v1512
        %v1727 = vmul.f32 %v1679, %v1513
        %v1728 = vmul.f32 %v1617, %v1514
        %v1729 = vmul.f32 %v1682, %v1515
        %v1730 = vmul.f32 %v1620, %v1516
        %v1731 = vmul.f32 %v1685, %v1517
        %v1732 = vmul.f32 %v1623, %v1518
        %v1733 = vmul.f32 %v1688, %v1519
        %v1734 = vmul.f32 %v1626, %v1520
        %v1735 = vmul.f32 %v1691, %v1521
        %v1736 = vmul.f32 %v1629, %v1522
        %v1737 = vmul.f32 %v1694, %v1523
        %v1738 = vmul.f32 %v1632, %v1524
        %v1739 = vmul.f32 %v1697, %v1525
        %v1740 = vmul.f32 %v1635, %v1526
        %v1741 = vmul.f32 %v1700, %v1527
        %v1742 = vmul.f32 %v1638, %v1528
        %v1743 = vmul.f32 %v1703, %v1529
        %v1744 = vmul.f32 %v1641, %v1530
        %v1745 = vmul.f32 %v1706, %v1531
        %v1746 = vmul.f32 %v1644, %v1532
        %v1747 = vmul.f32 %v1709, %v1533
        %v1748 = vmul.f32 %v1647, %v1534
        %v1749 = vmul.f32 %v1712, %v1535
        %v1750 = vmul.f32 %v1650, %v1536
        %v1751 = vmul.f32 %v1715, %v1537
        %v1752 = vmul.f32 %v1653, %v1538
        %v1753 = vmul.f32 %v1718, %v1539
        %v1754 = vmul.f32 %v1656, %v1540
        %v1755 = vmul.f32 %v1721, %v1541
        %v1756 = vmul.f32 %v1659, %v1542
        %v1757 = vmul.f32 %v1724, %v1543
        %v1758 = vld [vmem:[%s8] sm:$0xff]
        %v1759 = vld [vmem:[%s8 + $0x8] sm:$0xff]
        %v1760 = vld [vmem:[%s8 + $0x10] sm:$0xff]
        %v1761 = vld [vmem:[%s8 + $0x18] sm:$0xff]
        %v1762 = vld [vmem:[%s8 + $0x20] sm:$0xff]
        %v1763 = vld [vmem:[%s8 + $0x28] sm:$0xff]
        %v1764 = vld [vmem:[%s8 + $0x30] sm:$0xff]
        %v1765 = vld [vmem:[%s8 + $0x38] sm:$0xff]
        %v1766 = vld [vmem:[%s8 + $0x40] sm:$0xff]
        %v1767 = vld [vmem:[%s8 + $0x48] sm:$0xff]
        %v1768 = vld [vmem:[%s8 + $0x50] sm:$0xff]
        %v1769 = vld [vmem:[%s8 + $0x58] sm:$0xff]
        %v1770 = vld [vmem:[%s8 + $0x60] sm:$0xff]
        %v1771 = vld [vmem:[%s8 + $0x68] sm:$0xff]
        %v1772 = vld [vmem:[%s8 + $0x70] sm:$0xff]
        %v1773 = vld [vmem:[%s8 + $0x78] sm:$0xff]
        %v1774 = vld [vmem:[%s8 + $0x80] sm:$0xff]
        %v1775 = vld [vmem:[%s8 + $0x88] sm:$0xff]
        %v1776 = vld [vmem:[%s8 + $0x90] sm:$0xff]
        %v1777 = vld [vmem:[%s8 + $0x98] sm:$0xff]
        %v1778 = vld [vmem:[%s8 + $0xa0] sm:$0xff]
        %v1779 = vld [vmem:[%s8 + $0xa8] sm:$0xff]
        %v1780 = vld [vmem:[%s8 + $0xb0] sm:$0xff]
        %v1781 = vld [vmem:[%s8 + $0xb8] sm:$0xff]
        %v1782 = vld [vmem:[%s8 + $0xc0] sm:$0xff]
        %v1783 = vld [vmem:[%s8 + $0xc8] sm:$0xff]
        %v1784 = vld [vmem:[%s8 + $0xd0] sm:$0xff]
        %v1785 = vld [vmem:[%s8 + $0xd8] sm:$0xff]
        %v1786 = vld [vmem:[%s8 + $0xe0] sm:$0xff]
        %v1787 = vld [vmem:[%s8 + $0xe8] sm:$0xff]
        %v1788 = vld [vmem:[%s8 + $0xf0] sm:$0xff]
        %v1789 = vld [vmem:[%s8 + $0xf8] sm:$0xff]
        %1790 = vmatpush.msra.mxu0 %v1773
        %1791 = vmatpush.msra.mxu0 %v1772
        %1792 = vmatpush.msra.mxu0 %v1771
        %1793 = vmatpush.msra.mxu0 %v1770
        %1794 = vmatpush.msra.mxu0 %v1769
        %1795 = vmatpush.msra.mxu0 %v1768
        %1796 = vmatpush.msra.mxu0 %v1767
        %1797 = vmatpush.msra.mxu0 %v1766
        %1798 = vmatpush.msra.mxu0 %v1765
        %1799 = vmatpush.msra.mxu0 %v1764
        %1800 = vmatpush.msra.mxu0 %v1763
        %1801 = vmatpush.msra.mxu0 %v1762
        %1802 = vmatpush.msra.mxu0 %v1761
        %1803 = vmatpush.msra.mxu0 %v1760
        %1804 = vmatpush.msra.mxu0 %v1759
        %1805 = vmatpush.msra.mxu0 %v1758
        %1806 = vmatmul.f32.gmra.mxu0 %v1726
        %v1807 = vpop.f32.mrf.mxu0
        %v1808 = vadd.f32 0.0, %v1807
        %1809 = vmatmul.f32.gmra.mxu0 %v1728
        %v1810 = vpop.f32.mrf.mxu0
        %v1811 = vadd.f32 0.0, %v1810
        %1812 = vmatmul.f32.gmra.mxu0 %v1730
        %v1813 = vpop.f32.mrf.mxu0
        %v1814 = vadd.f32 0.0, %v1813
        %1815 = vmatmul.f32.gmra.mxu0 %v1732
        %v1816 = vpop.f32.mrf.mxu0
        %v1817 = vadd.f32 0.0, %v1816
        %1818 = vmatmul.f32.gmra.mxu0 %v1734
        %v1819 = vpop.f32.mrf.mxu0
        %v1820 = vadd.f32 0.0, %v1819
        %1821 = vmatmul.f32.gmra.mxu0 %v1736
        %v1822 = vpop.f32.mrf.mxu0
        %v1823 = vadd.f32 0.0, %v1822
        %1824 = vmatmul.f32.gmra.mxu0 %v1738
        %v1825 = vpop.f32.mrf.mxu0
        %v1826 = vadd.f32 0.0, %v1825
        %1827 = vmatmul.f32.gmra.mxu0 %v1740
        %v1828 = vpop.f32.mrf.mxu0
        %v1829 = vadd.f32 0.0, %v1828
        %1830 = vmatmul.f32.gmra.mxu0 %v1742
        %v1831 = vpop.f32.mrf.mxu0
        %v1832 = vadd.f32 0.0, %v1831
        %1833 = vmatmul.f32.gmra.mxu0 %v1744
        %v1834 = vpop.f32.mrf.mxu0
        %v1835 = vadd.f32 0.0, %v1834
        %1836 = vmatmul.f32.gmra.mxu0 %v1746
        %v1837 = vpop.f32.mrf.mxu0
        %v1838 = vadd.f32 0.0, %v1837
        %1839 = vmatmul.f32.gmra.mxu0 %v1748
        %v1840 = vpop.f32.mrf.mxu0
        %v1841 = vadd.f32 0.0, %v1840
        %1842 = vmatmul.f32.gmra.mxu0 %v1750
        %v1843 = vpop.f32.mrf.mxu0
        %v1844 = vadd.f32 0.0, %v1843
        %1845 = vmatmul.f32.gmra.mxu0 %v1752
        %v1846 = vpop.f32.mrf.mxu0
        %v1847 = vadd.f32 0.0, %v1846
        %1848 = vmatmul.f32.gmra.mxu0 %v1754
        %v1849 = vpop.f32.mrf.mxu0
        %v1850 = vadd.f32 0.0, %v1849
        %1851 = vmatmul.f32.gmra.mxu0 %v1756
        %v1852 = vpop.f32.mrf.mxu0
        %v1853 = vadd.f32 0.0, %v1852
        %1854 = vdwg.mxu0
        %1855 = vmatpush.msra.mxu0 %v1789
        %1856 = vmatpush.msra.mxu0 %v1788
        %1857 = vmatpush.msra.mxu0 %v1787
        %1858 = vmatpush.msra.mxu0 %v1786
        %1859 = vmatpush.msra.mxu0 %v1785
        %1860 = vmatpush.msra.mxu0 %v1784
        %1861 = vmatpush.msra.mxu0 %v1783
        %1862 = vmatpush.msra.mxu0 %v1782
        %1863 = vmatpush.msra.mxu0 %v1781
        %1864 = vmatpush.msra.mxu0 %v1780
        %1865 = vmatpush.msra.mxu0 %v1779
        %1866 = vmatpush.msra.mxu0 %v1778
        %1867 = vmatpush.msra.mxu0 %v1777
        %1868 = vmatpush.msra.mxu0 %v1776
        %1869 = vmatpush.msra.mxu0 %v1775
        %1870 = vmatpush.msra.mxu0 %v1774
        %1871 = vmatmul.f32.gmra.mxu0 %v1727
        %v1872 = vpop.f32.mrf.mxu0
        %v1873 = vadd.f32 %v1808, %v1872
        %1874 = vmatmul.f32.gmra.mxu0 %v1729
        %v1875 = vpop.f32.mrf.mxu0
        %v1876 = vadd.f32 %v1811, %v1875
        %1877 = vmatmul.f32.gmra.mxu0 %v1731
        %v1878 = vpop.f32.mrf.mxu0
        %v1879 = vadd.f32 %v1814, %v1878
        %1880 = vmatmul.f32.gmra.mxu0 %v1733
        %v1881 = vpop.f32.mrf.mxu0
        %v1882 = vadd.f32 %v1817, %v1881
        %1883 = vmatmul.f32.gmra.mxu0 %v1735
        %v1884 = vpop.f32.mrf.mxu0
        %v1885 = vadd.f32 %v1820, %v1884
        %1886 = vmatmul.f32.gmra.mxu0 %v1737
        %v1887 = vpop.f32.mrf.mxu0
        %v1888 = vadd.f32 %v1823, %v1887
        %1889 = vmatmul.f32.gmra.mxu0 %v1739
        %v1890 = vpop.f32.mrf.mxu0
        %v1891 = vadd.f32 %v1826, %v1890
        %1892 = vmatmul.f32.gmra.mxu0 %v1741
        %v1893 = vpop.f32.mrf.mxu0
        %v1894 = vadd.f32 %v1829, %v1893
        %1895 = vmatmul.f32.gmra.mxu0 %v1743
        %v1896 = vpop.f32.mrf.mxu0
        %v1897 = vadd.f32 %v1832, %v1896
        %1898 = vmatmul.f32.gmra.mxu0 %v1745
        %v1899 = vpop.f32.mrf.mxu0
        %v1900 = vadd.f32 %v1835, %v1899
        %1901 = vmatmul.f32.gmra.mxu0 %v1747
        %v1902 = vpop.f32.mrf.mxu0
        %v1903 = vadd.f32 %v1838, %v1902
        %1904 = vmatmul.f32.gmra.mxu0 %v1749
        %v1905 = vpop.f32.mrf.mxu0
        %v1906 = vadd.f32 %v1841, %v1905
        %1907 = vmatmul.f32.gmra.mxu0 %v1751
        %v1908 = vpop.f32.mrf.mxu0
        %v1909 = vadd.f32 %v1844, %v1908
        %1910 = vmatmul.f32.gmra.mxu0 %v1753
        %v1911 = vpop.f32.mrf.mxu0
        %v1912 = vadd.f32 %v1847, %v1911
        %1913 = vmatmul.f32.gmra.mxu0 %v1755
        %v1914 = vpop.f32.mrf.mxu0
        %v1915 = vadd.f32 %v1850, %v1914
        %1916 = vmatmul.f32.gmra.mxu0 %v1757
        %v1917 = vpop.f32.mrf.mxu0
        %v1918 = vadd.f32 %v1853, %v1917
        %1919 = vdwg.mxu0
        %v1920 = vmax.f32 %v1873, -4.59512
        %v1921 = vmax.f32 %v1876, -4.59512
        %v1922 = vmax.f32 %v1879, -4.59512
        %v1923 = vmax.f32 %v1882, -4.59512
        %v1924 = vmax.f32 %v1885, -4.59512
        %v1925 = vmax.f32 %v1888, -4.59512
        %v1926 = vmax.f32 %v1891, -4.59512
        %v1927 = vmax.f32 %v1894, -4.59512
        %v1928 = vmax.f32 %v1897, -4.59512
        %v1929 = vmax.f32 %v1900, -4.59512
        %v1930 = vmax.f32 %v1903, -4.59512
        %v1931 = vmax.f32 %v1906, -4.59512
        %v1932 = vmax.f32 %v1909, -4.59512
        %v1933 = vmax.f32 %v1912, -4.59512
        %v1934 = vmax.f32 %v1915, -4.59512
        %v1935 = vmax.f32 %v1918, -4.59512
        %v1936 = vmin.f32 %v1920, 4.59512
        %v1937 = vmin.f32 %v1921, 4.59512
        %v1938 = vmin.f32 %v1922, 4.59512
        %v1939 = vmin.f32 %v1923, 4.59512
        %v1940 = vmin.f32 %v1924, 4.59512
        %v1941 = vmin.f32 %v1925, 4.59512
        %v1942 = vmin.f32 %v1926, 4.59512
        %v1943 = vmin.f32 %v1927, 4.59512
        %v1944 = vmin.f32 %v1928, 4.59512
        %v1945 = vmin.f32 %v1929, 4.59512
        %v1946 = vmin.f32 %v1930, 4.59512
        %v1947 = vmin.f32 %v1931, 4.59512
        %v1948 = vmin.f32 %v1932, 4.59512
        %v1949 = vmin.f32 %v1933, 4.59512
        %v1950 = vmin.f32 %v1934, 4.59512
        %v1951 = vmin.f32 %v1935, 4.59512
        %v1952 = vld [vmem:[%s9] sm:$0xff]
        %v1953 = vld [vmem:[%s9 + $0x8] sm:$0xff]
        %1954 = vmatpush.msra.mxu0 0.0
        %1955 = vmatpush.msra.mxu0 0.0
        %1956 = vmatpush.msra.mxu0 0.0
        %1957 = vmatpush.msra.mxu0 0.0
        %1958 = vmatpush.msra.mxu0 0.0
        %1959 = vmatpush.msra.mxu0 0.0
        %1960 = vmatpush.msra.mxu0 0.0
        %1961 = vmatpush.msra.mxu0 0.0
        %1962 = vmatpush.msra.mxu0 0.0
        %1963 = vmatpush.msra.mxu0 0.0
        %1964 = vmatpush.msra.mxu0 0.0
        %1965 = vmatpush.msra.mxu0 0.0
        %1966 = vmatpush.msra.mxu0 0.0
        %1967 = vmatpush.msra.mxu0 0.0
        %1968 = vmatpush.msra.mxu0 %v1953
        %1969 = vmatpush.msra.mxu0 %v1952
        %1970 = vmatmul.f32.gmra.mxu0 %v901
        %v1971 = vpop.f32.mrf.mxu0
        %v1972 = vadd.f32 0.0, %v1971
        %1973 = vmatmul.f32.gmra.mxu0 %v904
        %v1974 = vpop.f32.mrf.mxu0
        %v1975 = vadd.f32 0.0, %v1974
        %1976 = vmatmul.f32.gmra.mxu0 %v907
        %v1977 = vpop.f32.mrf.mxu0
        %v1978 = vadd.f32 0.0, %v1977
        %1979 = vmatmul.f32.gmra.mxu0 %v910
        %v1980 = vpop.f32.mrf.mxu0
        %v1981 = vadd.f32 0.0, %v1980
        %1982 = vmatmul.f32.gmra.mxu0 %v913
        %v1983 = vpop.f32.mrf.mxu0
        %v1984 = vadd.f32 0.0, %v1983
        %1985 = vmatmul.f32.gmra.mxu0 %v916
        %v1986 = vpop.f32.mrf.mxu0
        %v1987 = vadd.f32 0.0, %v1986
        %1988 = vmatmul.f32.gmra.mxu0 %v919
        %v1989 = vpop.f32.mrf.mxu0
        %v1990 = vadd.f32 0.0, %v1989
        %1991 = vmatmul.f32.gmra.mxu0 %v922
        %v1992 = vpop.f32.mrf.mxu0
        %v1993 = vadd.f32 0.0, %v1992
        %1994 = vmatmul.f32.gmra.mxu0 %v925
        %v1995 = vpop.f32.mrf.mxu0
        %v1996 = vadd.f32 0.0, %v1995
        %1997 = vmatmul.f32.gmra.mxu0 %v928
        %v1998 = vpop.f32.mrf.mxu0
        %v1999 = vadd.f32 0.0, %v1998
        %2000 = vmatmul.f32.gmra.mxu0 %v931
        %v2001 = vpop.f32.mrf.mxu0
        %v2002 = vadd.f32 0.0, %v2001
        %2003 = vmatmul.f32.gmra.mxu0 %v934
        %v2004 = vpop.f32.mrf.mxu0
        %v2005 = vadd.f32 0.0, %v2004
        %2006 = vmatmul.f32.gmra.mxu0 %v937
        %v2007 = vpop.f32.mrf.mxu0
        %v2008 = vadd.f32 0.0, %v2007
        %2009 = vmatmul.f32.gmra.mxu0 %v940
        %v2010 = vpop.f32.mrf.mxu0
        %v2011 = vadd.f32 0.0, %v2010
        %2012 = vmatmul.f32.gmra.mxu0 %v943
        %v2013 = vpop.f32.mrf.mxu0
        %v2014 = vadd.f32 0.0, %v2013
        %2015 = vmatmul.f32.gmra.mxu0 %v946
        %v2016 = vpop.f32.mrf.mxu0
        %v2017 = vadd.f32 0.0, %v2016
        %2018 = vdwg.mxu0
        %v2019 = vld [vmem:[%s10] sm:$0x1]
        %v2021 = vperm.slane %v2019, 0
        %vm2023 = vcmp.gt.f32.partialorder %v1972, %v2021
        %vm2024 = vcmp.gt.f32.partialorder %v1975, %v2021
        %vm2025 = vcmp.gt.f32.partialorder %v1978, %v2021
        %vm2026 = vcmp.gt.f32.partialorder %v1981, %v2021
        %vm2027 = vcmp.gt.f32.partialorder %v1984, %v2021
        %vm2028 = vcmp.gt.f32.partialorder %v1987, %v2021
        %vm2029 = vcmp.gt.f32.partialorder %v1990, %v2021
        %vm2030 = vcmp.gt.f32.partialorder %v1993, %v2021
        %vm2031 = vcmp.gt.f32.partialorder %v1996, %v2021
        %vm2032 = vcmp.gt.f32.partialorder %v1999, %v2021
        %vm2033 = vcmp.gt.f32.partialorder %v2002, %v2021
        %vm2034 = vcmp.gt.f32.partialorder %v2005, %v2021
        %vm2035 = vcmp.gt.f32.partialorder %v2008, %v2021
        %vm2036 = vcmp.gt.f32.partialorder %v2011, %v2021
        %vm2037 = vcmp.gt.f32.partialorder %v2014, %v2021
        %vm2038 = vcmp.gt.f32.partialorder %v2017, %v2021
        %v2039 = vsel %vm2023, 1, 0
        %v2040 = vsel %vm2024, 1, 0
        %v2041 = vsel %vm2025, 1, 0
        %v2042 = vsel %vm2026, 1, 0
        %v2043 = vsel %vm2027, 1, 0
        %v2044 = vsel %vm2028, 1, 0
        %v2045 = vsel %vm2029, 1, 0
        %v2046 = vsel %vm2030, 1, 0
        %v2047 = vsel %vm2031, 1, 0
        %v2048 = vsel %vm2032, 1, 0
        %v2049 = vsel %vm2033, 1, 0
        %v2050 = vsel %vm2034, 1, 0
        %v2051 = vsel %vm2035, 1, 0
        %v2052 = vsel %vm2036, 1, 0
        %v2053 = vsel %vm2037, 1, 0
        %v2054 = vsel %vm2038, 1, 0
        %v2055 = vcvt.s32.f32 %v2039
        %v2056 = vcvt.s32.f32 %v2040
        %v2057 = vcvt.s32.f32 %v2041
        %v2058 = vcvt.s32.f32 %v2042
        %v2059 = vcvt.s32.f32 %v2043
        %v2060 = vcvt.s32.f32 %v2044
        %v2061 = vcvt.s32.f32 %v2045
        %v2062 = vcvt.s32.f32 %v2046
        %v2063 = vcvt.s32.f32 %v2047
        %v2064 = vcvt.s32.f32 %v2048
        %v2065 = vcvt.s32.f32 %v2049
        %v2066 = vcvt.s32.f32 %v2050
        %v2067 = vcvt.s32.f32 %v2051
        %v2068 = vcvt.s32.f32 %v2052
        %v2069 = vcvt.s32.f32 %v2053
        %v2070 = vcvt.s32.f32 %v2054
        %v2071 = vld [vmem:[%s11] sm:$0xff]
        %v2072 = vld [vmem:[%s11 + $0x8] sm:$0xff]
        %v2073 = vld [vmem:[%s11 + $0x10] sm:$0xff]
        %vm2074 = vcmask 195584
        %v2076 = vsel %vm2074, %v2055, 0
        %v2079 = vsel %vm2074, %v2056, 0
        %v2082 = vsel %vm2074, %v2057, 0
        %v2085 = vsel %vm2074, %v2058, 0
        %v2088 = vsel %vm2074, %v2059, 0
        %v2091 = vsel %vm2074, %v2060, 0
        %v2094 = vsel %vm2074, %v2061, 0
        %v2097 = vsel %vm2074, %v2062, 0
        %v2100 = vsel %vm2074, %v2063, 0
        %v2103 = vsel %vm2074, %v2064, 0
        %v2106 = vsel %vm2074, %v2065, 0
        %v2109 = vsel %vm2074, %v2066, 0
        %v2112 = vsel %vm2074, %v2067, 0
        %v2115 = vsel %vm2074, %v2068, 0
        %v2118 = vsel %vm2074, %v2069, 0
        %v2121 = vsel %vm2074, %v2070, 0
        %2123 = vmatpush.msra.mxu0 0.0
        %2124 = vmatpush.msra.mxu0 0.0
        %2125 = vmatpush.msra.mxu0 0.0
        %2126 = vmatpush.msra.mxu0 0.0
        %2127 = vmatpush.msra.mxu0 0.0
        %2128 = vmatpush.msra.mxu0 0.0
        %2129 = vmatpush.msra.mxu0 0.0
        %2130 = vmatpush.msra.mxu0 0.0
        %2131 = vmatpush.msra.mxu0 0.0
        %2132 = vmatpush.msra.mxu0 0.0
        %2133 = vmatpush.msra.mxu0 0.0
        %2134 = vmatpush.msra.mxu0 0.0
        %2135 = vmatpush.msra.mxu0 0.0
        %2136 = vmatpush.msra.mxu0 %v2073
        %2137 = vmatpush.msra.mxu0 %v2072
        %2138 = vmatpush.msra.mxu0 %v2071
        %2139 = vmatmul.f32.gmra.mxu0 %v2076
        %v2140 = vpop.f32.mrf.mxu0
        %v2141 = vadd.f32 0.0, %v2140
        %2142 = vmatmul.f32.gmra.mxu0 %v2079
        %v2143 = vpop.f32.mrf.mxu0
        %v2144 = vadd.f32 0.0, %v2143
        %2145 = vmatmul.f32.gmra.mxu0 %v2082
        %v2146 = vpop.f32.mrf.mxu0
        %v2147 = vadd.f32 0.0, %v2146
        %2148 = vmatmul.f32.gmra.mxu0 %v2085
        %v2149 = vpop.f32.mrf.mxu0
        %v2150 = vadd.f32 0.0, %v2149
        %2151 = vmatmul.f32.gmra.mxu0 %v2088
        %v2152 = vpop.f32.mrf.mxu0
        %v2153 = vadd.f32 0.0, %v2152
        %2154 = vmatmul.f32.gmra.mxu0 %v2091
        %v2155 = vpop.f32.mrf.mxu0
        %v2156 = vadd.f32 0.0, %v2155
        %2157 = vmatmul.f32.gmra.mxu0 %v2094
        %v2158 = vpop.f32.mrf.mxu0
        %v2159 = vadd.f32 0.0, %v2158
        %2160 = vmatmul.f32.gmra.mxu0 %v2097
        %v2161 = vpop.f32.mrf.mxu0
        %v2162 = vadd.f32 0.0, %v2161
        %2163 = vmatmul.f32.gmra.mxu0 %v2100
        %v2164 = vpop.f32.mrf.mxu0
        %v2165 = vadd.f32 0.0, %v2164
        %2166 = vmatmul.f32.gmra.mxu0 %v2103
        %v2167 = vpop.f32.mrf.mxu0
        %v2168 = vadd.f32 0.0, %v2167
        %2169 = vmatmul.f32.gmra.mxu0 %v2106
        %v2170 = vpop.f32.mrf.mxu0
        %v2171 = vadd.f32 0.0, %v2170
        %2172 = vmatmul.f32.gmra.mxu0 %v2109
        %v2173 = vpop.f32.mrf.mxu0
        %v2174 = vadd.f32 0.0, %v2173
        %2175 = vmatmul.f32.gmra.mxu0 %v2112
        %v2176 = vpop.f32.mrf.mxu0
        %v2177 = vadd.f32 0.0, %v2176
        %2178 = vmatmul.f32.gmra.mxu0 %v2115
        %v2179 = vpop.f32.mrf.mxu0
        %v2180 = vadd.f32 0.0, %v2179
        %2181 = vmatmul.f32.gmra.mxu0 %v2118
        %v2182 = vpop.f32.mrf.mxu0
        %v2183 = vadd.f32 0.0, %v2182
        %2184 = vmatmul.f32.gmra.mxu0 %v2121
        %v2185 = vpop.f32.mrf.mxu0
        %v2186 = vadd.f32 0.0, %v2185
        %2187 = vdwg.mxu0
        %v2188 = vld [vmem:[%s12] sm:$0xff]
        %vm2189 = vcmask 64512
        %v2191 = vsel %vm2189, %v2141, 0
        %v2194 = vsel %vm2189, %v2144, 0
        %v2197 = vsel %vm2189, %v2147, 0
        %v2200 = vsel %vm2189, %v2150, 0
        %v2203 = vsel %vm2189, %v2153, 0
        %v2206 = vsel %vm2189, %v2156, 0
        %v2209 = vsel %vm2189, %v2159, 0
        %v2212 = vsel %vm2189, %v2162, 0
        %v2215 = vsel %vm2189, %v2165, 0
        %v2218 = vsel %vm2189, %v2168, 0
        %v2221 = vsel %vm2189, %v2171, 0
        %v2224 = vsel %vm2189, %v2174, 0
        %v2227 = vsel %vm2189, %v2177, 0
        %v2230 = vsel %vm2189, %v2180, 0
        %v2233 = vsel %vm2189, %v2183, 0
        %v2236 = vsel %vm2189, %v2186, 0
        %2238 = vmatpush.msra.mxu0 0.0
        %2239 = vmatpush.msra.mxu0 0.0
        %2240 = vmatpush.msra.mxu0 0.0
        %2241 = vmatpush.msra.mxu0 0.0
        %2242 = vmatpush.msra.mxu0 0.0
        %2243 = vmatpush.msra.mxu0 0.0
        %2244 = vmatpush.msra.mxu0 0.0
        %2245 = vmatpush.msra.mxu0 0.0
        %2246 = vmatpush.msra.mxu0 0.0
        %2247 = vmatpush.msra.mxu0 0.0
        %2248 = vmatpush.msra.mxu0 0.0
        %2249 = vmatpush.msra.mxu0 0.0
        %2250 = vmatpush.msra.mxu0 0.0
        %2251 = vmatpush.msra.mxu0 0.0
        %2252 = vmatpush.msra.mxu0 0.0
        %2253 = vmatpush.msra.mxu0 %v2188
        %2254 = vmatmul.f32.gmra.mxu0 %v2191
        %v2255 = vpop.f32.mrf.mxu0
        %v2256 = vadd.f32 0.0, %v2255
        %2257 = vmatmul.f32.gmra.mxu0 %v2194
        %v2258 = vpop.f32.mrf.mxu0
        %v2259 = vadd.f32 0.0, %v2258
        %2260 = vmatmul.f32.gmra.mxu0 %v2197
        %v2261 = vpop.f32.mrf.mxu0
        %v2262 = vadd.f32 0.0, %v2261
        %2263 = vmatmul.f32.gmra.mxu0 %v2200
        %v2264 = vpop.f32.mrf.mxu0
        %v2265 = vadd.f32 0.0, %v2264
        %2266 = vmatmul.f32.gmra.mxu0 %v2203
        %v2267 = vpop.f32.mrf.mxu0
        %v2268 = vadd.f32 0.0, %v2267
        %2269 = vmatmul.f32.gmra.mxu0 %v2206
        %v2270 = vpop.f32.mrf.mxu0
        %v2271 = vadd.f32 0.0, %v2270
        %2272 = vmatmul.f32.gmra.mxu0 %v2209
        %v2273 = vpop.f32.mrf.mxu0
        %v2274 = vadd.f32 0.0, %v2273
        %2275 = vmatmul.f32.gmra.mxu0 %v2212
        %v2276 = vpop.f32.mrf.mxu0
        %v2277 = vadd.f32 0.0, %v2276
        %2278 = vmatmul.f32.gmra.mxu0 %v2215
        %v2279 = vpop.f32.mrf.mxu0
        %v2280 = vadd.f32 0.0, %v2279
        %2281 = vmatmul.f32.gmra.mxu0 %v2218
        %v2282 = vpop.f32.mrf.mxu0
        %v2283 = vadd.f32 0.0, %v2282
        %2284 = vmatmul.f32.gmra.mxu0 %v2221
        %v2285 = vpop.f32.mrf.mxu0
        %v2286 = vadd.f32 0.0, %v2285
        %2287 = vmatmul.f32.gmra.mxu0 %v2224
        %v2288 = vpop.f32.mrf.mxu0
        %v2289 = vadd.f32 0.0, %v2288
        %2290 = vmatmul.f32.gmra.mxu0 %v2227
        %v2291 = vpop.f32.mrf.mxu0
        %v2292 = vadd.f32 0.0, %v2291
        %2293 = vmatmul.f32.gmra.mxu0 %v2230
        %v2294 = vpop.f32.mrf.mxu0
        %v2295 = vadd.f32 0.0, %v2294
        %2296 = vmatmul.f32.gmra.mxu0 %v2233
        %v2297 = vpop.f32.mrf.mxu0
        %v2298 = vadd.f32 0.0, %v2297
        %2299 = vmatmul.f32.gmra.mxu0 %v2236
        %v2300 = vpop.f32.mrf.mxu0
        %v2301 = vadd.f32 0.0, %v2300
        %2302 = vdwg.mxu0
        %v2303 = vld [vmem:[%s13] sm:$0x1]
        %v2305 = vperm.slane %v2303, 0
        %v2307 = vsub.f32 %v2256, %v2305
        %v2308 = vsub.f32 %v2259, %v2305
        %v2309 = vsub.f32 %v2262, %v2305
        %v2310 = vsub.f32 %v2265, %v2305
        %v2311 = vsub.f32 %v2268, %v2305
        %v2312 = vsub.f32 %v2271, %v2305
        %v2313 = vsub.f32 %v2274, %v2305
        %v2314 = vsub.f32 %v2277, %v2305
        %v2315 = vsub.f32 %v2280, %v2305
        %v2316 = vsub.f32 %v2283, %v2305
        %v2317 = vsub.f32 %v2286, %v2305
        %v2318 = vsub.f32 %v2289, %v2305
        %v2319 = vsub.f32 %v2292, %v2305
        %v2320 = vsub.f32 %v2295, %v2305
        %v2321 = vsub.f32 %v2298, %v2305
        %v2322 = vsub.f32 %v2301, %v2305
        %v2323 = vand.u32 2147483647, %v2307
        %v2324 = vand.u32 2147483647, %v2308
        %v2325 = vand.u32 2147483647, %v2309
        %v2326 = vand.u32 2147483647, %v2310
        %v2327 = vand.u32 2147483647, %v2311
        %v2328 = vand.u32 2147483647, %v2312
        %v2329 = vand.u32 2147483647, %v2313
        %v2330 = vand.u32 2147483647, %v2314
        %v2331 = vand.u32 2147483647, %v2315
        %v2332 = vand.u32 2147483647, %v2316
        %v2333 = vand.u32 2147483647, %v2317
        %v2334 = vand.u32 2147483647, %v2318
        %v2335 = vand.u32 2147483647, %v2319
        %v2336 = vand.u32 2147483647, %v2320
        %v2337 = vand.u32 2147483647, %v2321
        %v2338 = vand.u32 2147483647, %v2322
        %vm2339 = vcmp.lt.f32.partialorder %v2323, 0.5
        %vm2340 = vcmp.lt.f32.partialorder %v2324, 0.5
        %vm2341 = vcmp.lt.f32.partialorder %v2325, 0.5
        %vm2342 = vcmp.lt.f32.partialorder %v2326, 0.5
        %vm2343 = vcmp.lt.f32.partialorder %v2327, 0.5
        %vm2344 = vcmp.lt.f32.partialorder %v2328, 0.5
        %vm2345 = vcmp.lt.f32.partialorder %v2329, 0.5
        %vm2346 = vcmp.lt.f32.partialorder %v2330, 0.5
        %vm2347 = vcmp.lt.f32.partialorder %v2331, 0.5
        %vm2348 = vcmp.lt.f32.partialorder %v2332, 0.5
        %vm2349 = vcmp.lt.f32.partialorder %v2333, 0.5
        %vm2350 = vcmp.lt.f32.partialorder %v2334, 0.5
        %vm2351 = vcmp.lt.f32.partialorder %v2335, 0.5
        %vm2352 = vcmp.lt.f32.partialorder %v2336, 0.5
        %vm2353 = vcmp.lt.f32.partialorder %v2337, 0.5
        %vm2354 = vcmp.lt.f32.partialorder %v2338, 0.5
        %v2355 = vsel %vm2339, 1, 0
        %v2356 = vsel %vm2340, 1, 0
        %v2357 = vsel %vm2341, 1, 0
        %v2358 = vsel %vm2342, 1, 0
        %v2359 = vsel %vm2343, 1, 0
        %v2360 = vsel %vm2344, 1, 0
        %v2361 = vsel %vm2345, 1, 0
        %v2362 = vsel %vm2346, 1, 0
        %v2363 = vsel %vm2347, 1, 0
        %v2364 = vsel %vm2348, 1, 0
        %v2365 = vsel %vm2349, 1, 0
        %v2366 = vsel %vm2350, 1, 0
        %v2367 = vsel %vm2351, 1, 0
        %v2368 = vsel %vm2352, 1, 0
        %v2369 = vsel %vm2353, 1, 0
        %v2370 = vsel %vm2354, 1, 0
        %v2371 = vcvt.s32.f32 %v2355
        %v2372 = vcvt.s32.f32 %v2356
        %v2373 = vcvt.s32.f32 %v2357
        %v2374 = vcvt.s32.f32 %v2358
        %v2375 = vcvt.s32.f32 %v2359
        %v2376 = vcvt.s32.f32 %v2360
        %v2377 = vcvt.s32.f32 %v2361
        %v2378 = vcvt.s32.f32 %v2362
        %v2379 = vcvt.s32.f32 %v2363
        %v2380 = vcvt.s32.f32 %v2364
        %v2381 = vcvt.s32.f32 %v2365
        %v2382 = vcvt.s32.f32 %v2366
        %v2383 = vcvt.s32.f32 %v2367
        %v2384 = vcvt.s32.f32 %v2368
        %v2385 = vcvt.s32.f32 %v2369
        %v2386 = vcvt.s32.f32 %v2370
        %v2387 = vld [vmem:[%s14] sm:$0xff]
        %v2388 = vld [vmem:[%s14 + $0x8] sm:$0xff]
        %v2389 = vld [vmem:[%s14 + $0x10] sm:$0xff]
        %v2390 = vld [vmem:[%s14 + $0x18] sm:$0xff]
        %v2392 = vsel %vm1199, %v1936, 0
        %v2395 = vsel %vm1199, %v1937, 0
        %v2398 = vsel %vm1199, %v1938, 0
        %v2401 = vsel %vm1199, %v1939, 0
        %v2404 = vsel %vm1199, %v1940, 0
        %v2407 = vsel %vm1199, %v1941, 0
        %v2410 = vsel %vm1199, %v1942, 0
        %v2413 = vsel %vm1199, %v1943, 0
        %v2416 = vsel %vm1199, %v1944, 0
        %v2419 = vsel %vm1199, %v1945, 0
        %v2422 = vsel %vm1199, %v1946, 0
        %v2425 = vsel %vm1199, %v1947, 0
        %v2428 = vsel %vm1199, %v1948, 0
        %v2431 = vsel %vm1199, %v1949, 0
        %v2434 = vsel %vm1199, %v1950, 0
        %v2437 = vsel %vm1199, %v1951, 0
        %2439 = vmatpush.msra.mxu0 0.0
        %2440 = vmatpush.msra.mxu0 0.0
        %2441 = vmatpush.msra.mxu0 0.0
        %2442 = vmatpush.msra.mxu0 0.0
        %2443 = vmatpush.msra.mxu0 0.0
        %2444 = vmatpush.msra.mxu0 0.0
        %2445 = vmatpush.msra.mxu0 0.0
        %2446 = vmatpush.msra.mxu0 0.0
        %2447 = vmatpush.msra.mxu0 0.0
        %2448 = vmatpush.msra.mxu0 0.0
        %2449 = vmatpush.msra.mxu0 0.0
        %2450 = vmatpush.msra.mxu0 0.0
        %2451 = vmatpush.msra.mxu0 %v2390
        %2452 = vmatpush.msra.mxu0 %v2389
        %2453 = vmatpush.msra.mxu0 %v2388
        %2454 = vmatpush.msra.mxu0 %v2387
        %2455 = vmatmul.f32.gmra.mxu0 %v2392
        %v2456 = vpop.f32.mrf.mxu0
        %v2457 = vadd.f32 0.0, %v2456
        %2458 = vmatmul.f32.gmra.mxu0 %v2395
        %v2459 = vpop.f32.mrf.mxu0
        %v2460 = vadd.f32 0.0, %v2459
        %2461 = vmatmul.f32.gmra.mxu0 %v2398
        %v2462 = vpop.f32.mrf.mxu0
        %v2463 = vadd.f32 0.0, %v2462
        %2464 = vmatmul.f32.gmra.mxu0 %v2401
        %v2465 = vpop.f32.mrf.mxu0
        %v2466 = vadd.f32 0.0, %v2465
        %2467 = vmatmul.f32.gmra.mxu0 %v2404
        %v2468 = vpop.f32.mrf.mxu0
        %v2469 = vadd.f32 0.0, %v2468
        %2470 = vmatmul.f32.gmra.mxu0 %v2407
        %v2471 = vpop.f32.mrf.mxu0
        %v2472 = vadd.f32 0.0, %v2471
        %2473 = vmatmul.f32.gmra.mxu0 %v2410
        %v2474 = vpop.f32.mrf.mxu0
        %v2475 = vadd.f32 0.0, %v2474
        %2476 = vmatmul.f32.gmra.mxu0 %v2413
        %v2477 = vpop.f32.mrf.mxu0
        %v2478 = vadd.f32 0.0, %v2477
        %2479 = vmatmul.f32.gmra.mxu0 %v2416
        %v2480 = vpop.f32.mrf.mxu0
        %v2481 = vadd.f32 0.0, %v2480
        %2482 = vmatmul.f32.gmra.mxu0 %v2419
        %v2483 = vpop.f32.mrf.mxu0
        %v2484 = vadd.f32 0.0, %v2483
        %2485 = vmatmul.f32.gmra.mxu0 %v2422
        %v2486 = vpop.f32.mrf.mxu0
        %v2487 = vadd.f32 0.0, %v2486
        %2488 = vmatmul.f32.gmra.mxu0 %v2425
        %v2489 = vpop.f32.mrf.mxu0
        %v2490 = vadd.f32 0.0, %v2489
        %2491 = vmatmul.f32.gmra.mxu0 %v2428
        %v2492 = vpop.f32.mrf.mxu0
        %v2493 = vadd.f32 0.0, %v2492
        %2494 = vmatmul.f32.gmra.mxu0 %v2431
        %v2495 = vpop.f32.mrf.mxu0
        %v2496 = vadd.f32 0.0, %v2495
        %2497 = vmatmul.f32.gmra.mxu0 %v2434
        %v2498 = vpop.f32.mrf.mxu0
        %v2499 = vadd.f32 0.0, %v2498
        %2500 = vmatmul.f32.gmra.mxu0 %v2437
        %v2501 = vpop.f32.mrf.mxu0
        %v2502 = vadd.f32 0.0, %v2501
        %2503 = vdwg.mxu0
        %v2504 = vmul.f32 %v2457, %v2371
        %v2505 = vmul.f32 %v2460, %v2372
        %v2506 = vmul.f32 %v2463, %v2373
        %v2507 = vmul.f32 %v2466, %v2374
        %v2508 = vmul.f32 %v2469, %v2375
        %v2509 = vmul.f32 %v2472, %v2376
        %v2510 = vmul.f32 %v2475, %v2377
        %v2511 = vmul.f32 %v2478, %v2378
        %v2512 = vmul.f32 %v2481, %v2379
        %v2513 = vmul.f32 %v2484, %v2380
        %v2514 = vmul.f32 %v2487, %v2381
        %v2515 = vmul.f32 %v2490, %v2382
        %v2516 = vmul.f32 %v2493, %v2383
        %v2517 = vmul.f32 %v2496, %v2384
        %v2518 = vmul.f32 %v2499, %v2385
        %v2519 = vmul.f32 %v2502, %v2386
        %v2520 = vld [vmem:[%s15] sm:$0xff]
        %v2521 = vld [vmem:[%s15 + $0x8] sm:$0xff]
        %v2522 = vld [vmem:[%s15 + $0x10] sm:$0xff]
        %v2523 = vld [vmem:[%s15 + $0x18] sm:$0xff]
        %v2524 = vld [vmem:[%s15 + $0x20] sm:$0xff]
        %v2525 = vld [vmem:[%s15 + $0x28] sm:$0xff]
        %v2526 = vld [vmem:[%s15 + $0x30] sm:$0xff]
        %v2527 = vld [vmem:[%s15 + $0x38] sm:$0xff]
        %vm2528 = vcmask 523264
        %v2530 = vsel %vm2528, %v2504, 0
        %v2533 = vsel %vm2528, %v2505, 0
        %v2536 = vsel %vm2528, %v2506, 0
        %v2539 = vsel %vm2528, %v2507, 0
        %v2542 = vsel %vm2528, %v2508, 0
        %v2545 = vsel %vm2528, %v2509, 0
        %v2548 = vsel %vm2528, %v2510, 0
        %v2551 = vsel %vm2528, %v2511, 0
        %v2554 = vsel %vm2528, %v2512, 0
        %v2557 = vsel %vm2528, %v2513, 0
        %v2560 = vsel %vm2528, %v2514, 0
        %v2563 = vsel %vm2528, %v2515, 0
        %v2566 = vsel %vm2528, %v2516, 0
        %v2569 = vsel %vm2528, %v2517, 0
        %v2572 = vsel %vm2528, %v2518, 0
        %v2575 = vsel %vm2528, %v2519, 0
        %2577 = vmatpush.msra.mxu0 0.0
        %2578 = vmatpush.msra.mxu0 0.0
        %2579 = vmatpush.msra.mxu0 0.0
        %2580 = vmatpush.msra.mxu0 0.0
        %2581 = vmatpush.msra.mxu0 0.0
        %2582 = vmatpush.msra.mxu0 0.0
        %2583 = vmatpush.msra.mxu0 0.0
        %2584 = vmatpush.msra.mxu0 0.0
        %2585 = vmatpush.msra.mxu0 %v2527
        %2586 = vmatpush.msra.mxu0 %v2526
        %2587 = vmatpush.msra.mxu0 %v2525
        %2588 = vmatpush.msra.mxu0 %v2524
        %2589 = vmatpush.msra.mxu0 %v2523
        %2590 = vmatpush.msra.mxu0 %v2522
        %2591 = vmatpush.msra.mxu0 %v2521
        %2592 = vmatpush.msra.mxu0 %v2520
        %2593 = vmatmul.f32.gmra.mxu0 %v2530
        %v2594 = vpop.f32.mrf.mxu0
        %v2595 = vadd.f32 0.0, %v2594
        %2596 = vmatmul.f32.gmra.mxu0 %v2533
        %v2597 = vpop.f32.mrf.mxu0
        %v2598 = vadd.f32 0.0, %v2597
        %2599 = vmatmul.f32.gmra.mxu0 %v2536
        %v2600 = vpop.f32.mrf.mxu0
        %v2601 = vadd.f32 0.0, %v2600
        %2602 = vmatmul.f32.gmra.mxu0 %v2539
        %v2603 = vpop.f32.mrf.mxu0
        %v2604 = vadd.f32 0.0, %v2603
        %2605 = vmatmul.f32.gmra.mxu0 %v2542
        %v2606 = vpop.f32.mrf.mxu0
        %v2607 = vadd.f32 0.0, %v2606
        %2608 = vmatmul.f32.gmra.mxu0 %v2545
        %v2609 = vpop.f32.mrf.mxu0
        %v2610 = vadd.f32 0.0, %v2609
        %2611 = vmatmul.f32.gmra.mxu0 %v2548
        %v2612 = vpop.f32.mrf.mxu0
        %v2613 = vadd.f32 0.0, %v2612
        %2614 = vmatmul.f32.gmra.mxu0 %v2551
        %v2615 = vpop.f32.mrf.mxu0
        %v2616 = vadd.f32 0.0, %v2615
        %2617 = vmatmul.f32.gmra.mxu0 %v2554
        %v2618 = vpop.f32.mrf.mxu0
        %v2619 = vadd.f32 0.0, %v2618
        %2620 = vmatmul.f32.gmra.mxu0 %v2557
        %v2621 = vpop.f32.mrf.mxu0
        %v2622 = vadd.f32 0.0, %v2621
        %2623 = vmatmul.f32.gmra.mxu0 %v2560
        %v2624 = vpop.f32.mrf.mxu0
        %v2625 = vadd.f32 0.0, %v2624
        %2626 = vmatmul.f32.gmra.mxu0 %v2563
        %v2627 = vpop.f32.mrf.mxu0
        %v2628 = vadd.f32 0.0, %v2627
        %2629 = vmatmul.f32.gmra.mxu0 %v2566
        %v2630 = vpop.f32.mrf.mxu0
        %v2631 = vadd.f32 0.0, %v2630
        %2632 = vmatmul.f32.gmra.mxu0 %v2569
        %v2633 = vpop.f32.mrf.mxu0
        %v2634 = vadd.f32 0.0, %v2633
        %2635 = vmatmul.f32.gmra.mxu0 %v2572
        %v2636 = vpop.f32.mrf.mxu0
        %v2637 = vadd.f32 0.0, %v2636
        %2638 = vmatmul.f32.gmra.mxu0 %v2575
        %v2639 = vpop.f32.mrf.mxu0
        %v2640 = vadd.f32 0.0, %v2639
        %2641 = vdwg.mxu0
        %v2642 = vsub.f32 0.0, %v2595
        %v2643 = vsub.f32 0.0, %v2598
        %v2644 = vsub.f32 0.0, %v2601
        %v2645 = vsub.f32 0.0, %v2604
        %v2646 = vsub.f32 0.0, %v2607
        %v2647 = vsub.f32 0.0, %v2610
        %v2648 = vsub.f32 0.0, %v2613
        %v2649 = vsub.f32 0.0, %v2616
        %v2650 = vsub.f32 0.0, %v2619
        %v2651 = vsub.f32 0.0, %v2622
        %v2652 = vsub.f32 0.0, %v2625
        %v2653 = vsub.f32 0.0, %v2628
        %v2654 = vsub.f32 0.0, %v2631
        %v2655 = vsub.f32 0.0, %v2634
        %v2656 = vsub.f32 0.0, %v2637
        %v2657 = vsub.f32 0.0, %v2640
        %v2658 = vmul.f32 %v2642, 1.442695
        %v2659 = vpow.pop %v2658
        %v2660 = vmul.f32 %v2643, 1.442695
        %v2661 = vpow.pop %v2660
        %v2662 = vmul.f32 %v2644, 1.442695
        %v2663 = vpow.pop %v2662
        %v2664 = vmul.f32 %v2645, 1.442695
        %v2665 = vpow.pop %v2664
        %v2666 = vmul.f32 %v2646, 1.442695
        %v2667 = vpow.pop %v2666
        %v2668 = vmul.f32 %v2647, 1.442695
        %v2669 = vpow.pop %v2668
        %v2670 = vmul.f32 %v2648, 1.442695
        %v2671 = vpow.pop %v2670
        %v2672 = vmul.f32 %v2649, 1.442695
        %v2673 = vpow.pop %v2672
        %v2674 = vmul.f32 %v2650, 1.442695
        %v2675 = vpow.pop %v2674
        %v2676 = vmul.f32 %v2651, 1.442695
        %v2677 = vpow.pop %v2676
        %v2678 = vmul.f32 %v2652, 1.442695
        %v2679 = vpow.pop %v2678
        %v2680 = vmul.f32 %v2653, 1.442695
        %v2681 = vpow.pop %v2680
        %v2682 = vmul.f32 %v2654, 1.442695
        %v2683 = vpow.pop %v2682
        %v2684 = vmul.f32 %v2655, 1.442695
        %v2685 = vpow.pop %v2684
        %v2686 = vmul.f32 %v2656, 1.442695
        %v2687 = vpow.pop %v2686
        %v2688 = vmul.f32 %v2657, 1.442695
        %v2689 = vpow.pop %v2688
        %v2690 = vadd.f32 %v2659, 1.0
        %v2691 = vadd.f32 %v2661, 1.0
        %v2692 = vadd.f32 %v2663, 1.0
        %v2693 = vadd.f32 %v2665, 1.0
        %v2694 = vadd.f32 %v2667, 1.0
        %v2695 = vadd.f32 %v2669, 1.0
        %v2696 = vadd.f32 %v2671, 1.0
        %v2697 = vadd.f32 %v2673, 1.0
        %v2698 = vadd.f32 %v2675, 1.0
        %v2699 = vadd.f32 %v2677, 1.0
        %v2700 = vadd.f32 %v2679, 1.0
        %v2701 = vadd.f32 %v2681, 1.0
        %v2702 = vadd.f32 %v2683, 1.0
        %v2703 = vadd.f32 %v2685, 1.0
        %v2704 = vadd.f32 %v2687, 1.0
        %v2705 = vadd.f32 %v2689, 1.0
        %v2706 = vrcp.pop %v2690
        %v2707 = vrcp.pop %v2691
        %v2708 = vrcp.pop %v2692
        %v2709 = vrcp.pop %v2693
        %v2710 = vrcp.pop %v2694
        %v2711 = vrcp.pop %v2695
        %v2712 = vrcp.pop %v2696
        %v2713 = vrcp.pop %v2697
        %v2714 = vrcp.pop %v2698
        %v2715 = vrcp.pop %v2699
        %v2716 = vrcp.pop %v2700
        %v2717 = vrcp.pop %v2701
        %v2718 = vrcp.pop %v2702
        %v2719 = vrcp.pop %v2703
        %v2720 = vrcp.pop %v2704
        %v2721 = vrcp.pop %v2705
        %v2722 = vmax.f32 %v2706, 0.01
        %v2723 = vmax.f32 %v2707, 0.01
        %v2724 = vmax.f32 %v2708, 0.01
        %v2725 = vmax.f32 %v2709, 0.01
        %v2726 = vmax.f32 %v2710, 0.01
        %v2727 = vmax.f32 %v2711, 0.01
        %v2728 = vmax.f32 %v2712, 0.01
        %v2729 = vmax.f32 %v2713, 0.01
        %v2730 = vmax.f32 %v2714, 0.01
        %v2731 = vmax.f32 %v2715, 0.01
        %v2732 = vmax.f32 %v2716, 0.01
        %v2733 = vmax.f32 %v2717, 0.01
        %v2734 = vmax.f32 %v2718, 0.01
        %v2735 = vmax.f32 %v2719, 0.01
        %v2736 = vmax.f32 %v2720, 0.01
        %v2737 = vmax.f32 %v2721, 0.01
        %v2738 = vmin.f32 %v2722, 0.99
        %v2739 = vmin.f32 %v2723, 0.99
        %v2740 = vmin.f32 %v2724, 0.99
        %v2741 = vmin.f32 %v2725, 0.99
        %v2742 = vmin.f32 %v2726, 0.99
        %v2743 = vmin.f32 %v2727, 0.99
        %v2744 = vmin.f32 %v2728, 0.99
        %v2745 = vmin.f32 %v2729, 0.99
        %v2746 = vmin.f32 %v2730, 0.99
        %v2747 = vmin.f32 %v2731, 0.99
        %v2748 = vmin.f32 %v2732, 0.99
        %v2749 = vmin.f32 %v2733, 0.99
        %v2750 = vmin.f32 %v2734, 0.99
        %v2751 = vmin.f32 %v2735, 0.99
        %v2752 = vmin.f32 %v2736, 0.99
        %v2753 = vmin.f32 %v2737, 0.99
        %2754 = vst [vmem:[%s531] sm:$0xff] %v2738
        %2755 = vst [vmem:[%s531 + $0x8] sm:$0xff] %v2739
        %2756 = vst [vmem:[%s531 + $0x10] sm:$0xff] %v2740
        %2757 = vst [vmem:[%s531 + $0x18] sm:$0xff] %v2741
        %2758 = vst [vmem:[%s531 + $0x20] sm:$0xff] %v2742
        %2759 = vst [vmem:[%s531 + $0x28] sm:$0xff] %v2743
        %2760 = vst [vmem:[%s531 + $0x30] sm:$0xff] %v2744
        %2761 = vst [vmem:[%s531 + $0x38] sm:$0xff] %v2745
        %2762 = vst [vmem:[%s531 + $0x40] sm:$0xff] %v2746
        %2763 = vst [vmem:[%s531 + $0x48] sm:$0xff] %v2747
        %2764 = vst [vmem:[%s531 + $0x50] sm:$0xff] %v2748
        %2765 = vst [vmem:[%s531 + $0x58] sm:$0xff] %v2749
        %2766 = vst [vmem:[%s531 + $0x60] sm:$0xff] %v2750
        %2767 = vst [vmem:[%s531 + $0x68] sm:$0xff] %v2751
        %2768 = vst [vmem:[%s531 + $0x70] sm:$0xff] %v2752
        %2769 = vst [vmem:[%s531 + $0x78] sm:$0xff] %v2753
        %s2770 = sand.u32 %s384, 1
        %s2771 = scalar_lea.sflag [#allocation3], %s2770
        %s2772 = sand.u32 %s384, 1
        %s2773 = smul.addr %s2772, 128
        %s2774 = scalar_lea.vmem [#allocation2], %s2773
        // Predicated region
        $region85: #{tpu_custom_call.1} parent=83 // pred_check
          %p2775 = pneg %p394
        $region86: #{tpu_custom_call.1} parent=83 // pred_check_branch
          %2777 = sbr.rel (%p2775) target = $region88
        $region87: #{tpu_custom_call.1} parent=83 // pred_region
          %s2778 = smul.u32 16, %s30
          %2780 = vsyncadd %s2771, 0
          %s2781 = smul.addr %s2778, 8
          %s2782 = scalar_lea.hbm %s16, %s2781
          %s2783 = sshll.u32 %s2774, 4
          %s2784 = int_to_ptr.vmem [resolvable:$true] %s2783
          %s2785 = sshll.u32 %s2782, 4
          %s2786 = int_to_ptr.hbm [resolvable:$true] %s2785
          %2791 = dma.vmem_to_hbm [thread:$0]  %s2784, 2048, %s2786, %s2771, 128, 128, 8
        $region88: #{tpu_custom_call.1} parent=83 // pred_fallthru
          _
      $region84: #{tpu_custom_call.1} parent=5 // pred_fallthru
        _
      %p2792 = scmp.le.s32.totalorder 2, %s25
      // Predicated region
      $region89: #{tpu_custom_call.1} parent=5 // pred_check
        %p2793 = pneg %p2792
      $region90: #{tpu_custom_call.1} parent=5 // pred_check_branch
        %2795 = sbr.rel (%p2793) target = $region92
      $region91: #{tpu_custom_call.1} parent=5 // pred_region
        %s2796 = ssub.s32 %s25, 2
        // Predicated region
        $region93: #{tpu_custom_call.1} parent=91 // pred_check
          %p2797 = pneg %p400
        $region94: #{tpu_custom_call.1} parent=91 // pred_check_branch
          %2799 = sbr.rel (%p2797) target = $region96
        $region95: #{tpu_custom_call.1} parent=91 // pred_region
          %s2800 = sand.u32 %s385, 1
          %s2801 = scalar_lea.sflag [#allocation3], %s2800
          %s2802 = sand.u32 %s385, 1
          %s2803 = smul.addr %s2802, 128
          %s2804 = scalar_lea.vmem [#allocation2], %s2803
          %2806 = dma.done %s2801, 2048
        $region96: #{tpu_custom_call.1} parent=91 // pred_fallthru
          _
      $region92: #{tpu_custom_call.1} parent=5 // pred_fallthru
        _
    $region6: #{tpu_custom_call.1} parent=1 // loop_footer
      %s29 = sadd.s32 1, %s25
    $region7: #{tpu_custom_call.1} parent=1 // loop_footer_branch
      %24 = sbr.rel target = $region3
    $region8: #{tpu_custom_call.1} parent=1 // loop_exit
      _
    %2807 = vsyncpa [#allocation3], 1
    %s2808 = scalar_lea.sflag [#allocation3], 1
    %2809 = vsyncpa %s2808, 1

</llo_original>
